<compile_context>
chip_gen: v7x
topology: tpu7x:2x2x1
jax: 0.10.0
libtpu: 0.0.40
codegen_flags: <defaults>
</compile_context>

<pallas_src>
import functools

import jax
import jax.numpy as jnp
from jax import lax
from jax.experimental import pallas as pl
from jax.experimental.pallas import tpu as pltpu


def _residual_layer_kernel(x_ref, w_ref, b_ref, o_ref, xp_sc, *,
                           dilations, ksize, t_tile, seq_len,
                           halo_left, halo_right):
    """One fused ResidualLayer in (C, T) layout (time on the lane axis).

    x_ref : (C, T)         unpadded layer input, resident per batch element.
    w_ref : (n_d, C, K*C)  fused tap weights; w_ref[i][:, k*C:(k+1)*C] = W_k.
    b_ref : (n_d, C, 1)    biases.
    o_ref : (C, t_tile)    output tile (residual already added), lane dense.
    xp_sc : (C, halo_left + T + halo_right) f32 scratch: zero-padded copy of
            x, rebuilt once per batch element at the first time tile.
    """
    C, T = x_ref.shape
    Tp = halo_left + T + halo_right
    tt = pl.program_id(1)

    # Build the zero-padded copy of x in VMEM once per batch element.  This
    # replaces the old host-side jnp.pad (an extra full HBM write + read of
    # the activation per layer) with a single cheap VMEM->VMEM pass.
    @pl.when(tt == 0)
    def _init_padded_input():
        if halo_left > 0:
            xp_sc[:, 0:halo_left] = jnp.zeros((C, halo_left), xp_sc.dtype)
        if halo_right > 0:
            xp_sc[:, halo_left + T:Tp] = jnp.zeros((C, halo_right), xp_sc.dtype)
        xp_sc[:, halo_left:halo_left + T] = x_ref[...].astype(xp_sc.dtype)

    base = pl.multiple_of(tt * t_tile, t_tile)      # lane-aligned window start
    win = t_tile + halo_left + halo_right

    # Stage-0 window has EXACT zeros outside [0, T): the first conv sees the
    # reference's zero padding with no masking work at all.
    h = xp_sc[:, pl.ds(base, win)]                  # (C, win), f32
    width = win
    g0 = base - halo_left                           # global time of column 0

    for i, d in enumerate(dilations):
        # LeakyReLU(0.2); leaky(0) == 0, so padding zeros stay zero.
        ha = jnp.where(h > 0.0, h, 0.2 * h)

        # Reproduce the reference's per-conv zero padding for later stages:
        # any column whose global time lies outside [0, T) must read as zero.
        # Only the first / last time tiles ever have such columns; interior
        # tiles pay one redundant (cheap) select per stage.
        if i > 0:
            col_g = g0 + lax.broadcasted_iota(jnp.int32, (1, width), 1)
            valid = jnp.logical_and(col_g >= 0, col_g < seq_len)
            ha = jnp.where(valid, ha, 0.0)

        trim = (ksize - 1) * d
        out_w = width - trim
        # Fused taps: one matmul of contraction depth K*C (accumulates inside
        # the MXU) instead of K tiny C-deep matmuls + K-1 full-tile VALU adds.
        x_cat = jnp.concatenate(
            [ha[:, k * d:k * d + out_w] for k in range(ksize)], axis=0)
        h = jnp.dot(w_ref[i], x_cat,
                    preferred_element_type=jnp.float32) + b_ref[i]
        width = out_w
        g0 = g0 + trim // 2

    # Residual add: original rows read straight from the unpadded, lane
    # aligned resident input (no unaligned access needed here).
    res = x_ref[:, pl.ds(base, t_tile)].astype(jnp.float32)
    o_ref[...] = (h + res).astype(o_ref.dtype)


def _pick_t_tile(T, max_tile=1024):
    """Largest multiple-of-128 divisor of T that is <= max_tile, else T."""
    if T <= max_tile:
        return T
    for cand in range(max_tile, 127, -128):
        if T % cand == 0:
            return cand
    # TODO(synk): ragged last tile unsupported; fall back to a single tile.
    return T


def residual_layer_pallas(x_bct, w_flat, b_col, dilations, kernel_size,
                          t_tile=None):
    """One ResidualLayer.  x_bct: (B, C, T).  w_flat: (n_d, C, K*C), b_col: (n_d, C, 1)."""
    B, C, T = x_bct.shape
    K = kernel_size
    n_d = len(dilations)
    assert w_flat.shape == (n_d, C, K * C) and b_col.shape == (n_d, C, 1)

    lefts = [((K - 1) * d) // 2 for d in dilations]
    rights = [(K - 1) * d - l for d, l in zip(dilations, lefts)]
    halo_left, halo_right = sum(lefts), sum(rights)

    if t_tile is None:
        t_tile = _pick_t_tile(T)
    assert T % t_tile == 0 and (t_tile % 128 == 0 or t_tile == T), (T, t_tile)
    num_t = T // t_tile
    Tp = halo_left + T + halo_right

    kernel = functools.partial(
        _residual_layer_kernel,
        dilations=tuple(dilations), ksize=K, t_tile=t_tile, seq_len=T,
        halo_left=halo_left, halo_right=halo_right)

    # VMEM budget from actual buffer sizes (double-buffered inputs/outputs +
    # the padded scratch), with headroom; capped for v7x's 64 MiB VMEM.
    bpe = 4
    vmem_bytes = bpe * (2 * C * T + 2 * C * t_tile + C * Tp
                        + 2 * n_d * (C * K * C + C))
    vmem_limit = int(min(max(2 * vmem_bytes + (4 << 20), 32 << 20), 64 << 20))

    return pl.pallas_call(
        kernel,
        out_shape=jax.ShapeDtypeStruct((B, C, T), x_bct.dtype),
        grid=(B, num_t),
        in_specs=[
            # Full (C, T) block per batch element, constant over the time-tile
            # axis -> DMA'd from HBM exactly once per batch element.
            pl.BlockSpec((None, C, T), lambda b, t: (b, 0, 0)),
            pl.BlockSpec((n_d, C, K * C), lambda b, t: (0, 0, 0)),
            pl.BlockSpec((n_d, C, 1), lambda b, t: (0, 0, 0)),
        ],
        out_specs=pl.BlockSpec((None, C, t_tile), lambda b, t: (b, 0, t)),
        scratch_shapes=[pltpu.VMEM((C, Tp), jnp.float32)],
        compiler_params=pltpu.CompilerParams(
            # batch parallel (megacore splits on batch, input not duplicated),
            # time arbitrary (sequential -> scratch init at tile 0 is valid).
            dimension_semantics=("parallel", "arbitrary"),
            vmem_limit_bytes=vmem_limit),
    )(x_bct, w_flat, b_col)


def pack_layer_params(torch_params_for_layer, kernel_size):
    """PyTorch conv params [(w (O,I,K), b (O,)), ...] -> (n_d, C, K*C), (n_d, C, 1)."""
    ws, bs = [], []
    for w, b in torch_params_for_layer:
        O, I, K = w.shape
        assert K == kernel_size
        ws.append(jnp.transpose(w, (0, 2, 1)).reshape(O, K * I))  # blocks by tap k
        bs.append(b.reshape(O, 1))
    return jnp.stack(ws, axis=0), jnp.stack(bs, axis=0)


def residual_block_forward(x_nct, layer_params, kernel_size, dilations_list,
                           t_tile=None):
    """Full ResidualBlock forward in NCT layout (same as the PyTorch module)."""
    y = x_nct
    for dilations, (w_flat, b_col) in zip(dilations_list, layer_params):
        y = residual_layer_pallas(y, w_flat, b_col, dilations, kernel_size,
                                  t_tile=t_tile)
    return y


def residual_block_reference(x_nct, torch_params, kernel_size, dilations_list):
    """Pure-JAX reference mirroring the PyTorch module (NCT layout)."""
    y = x_nct
    idx = 0
    for dilations in dilations_list:
        h = y
        for d in dilations:
            w_oik, b_c = torch_params[idx]
            idx += 1
            h = jnp.where(h > 0, h, 0.2 * h)
            p = (kernel_size - 1) * d
            left, right = p // 2, p - p // 2
            h = lax.conv_general_dilated(
                h, w_oik, window_strides=(1,), padding=[(left, right)],
                rhs_dilation=(d,), dimension_numbers=("NCH", "OIH", "NCH"),
                precision=lax.Precision.HIGHEST,
            ) + b_c[None, :, None]
        y = y + h
    return y


if __name__ == "__main__":
    # Small config consistent with the module: dim channels, 1D sequence (NCT).
    dim = 32
    kernel_size = 3
    dilations_list = ((1, 3), (1, 3, 9))
    B, T = 2, 768
    t_tile = 256          # 3 time tiles -> exercises first / interior / last tile

    key = jax.random.PRNGKey(0)
    key, kx = jax.random.split(key)
    x = jax.random.normal(kx, (B, dim, T), jnp.float32)   # (B, C, T) like PyTorch

    # Deterministic synthetic parameters: one conv per dilation per layer.
    torch_params = []     # PyTorch layout: weight (O, I, K), bias (O,)
    layer_params = []     # Pallas layout: per layer (n_d, C, K*C), (n_d, C, 1)
    for dilations in dilations_list:
        per_layer = []
        for _ in dilations:
            key, kw, kb = jax.random.split(key, 3)
            w = 0.1 * jax.random.normal(kw, (dim, dim, kernel_size), jnp.float32)
            b = 0.1 * jax.random.normal(kb, (dim,), jnp.float32)
            torch_params.append((w, b))
            per_layer.append((w, b))
        layer_params.append(pack_layer_params(per_layer, kernel_size))
    layer_params = tuple(layer_params)

    fwd = jax.jit(residual_block_forward, static_argnums=(2, 3, 4))
    out = fwd(x, layer_params, kernel_size, dilations_list, t_tile)
    out = jax.block_until_ready(out)

    ref = residual_block_reference(x, torch_params, kernel_size, dilations_list)
    assert out.shape == x.shape == ref.shape
    max_err = float(jnp.max(jnp.abs(out - ref)))
    assert jnp.allclose(out, ref, rtol=1e-4, atol=1e-4), max_err

    print("KERNEL_OK")
</pallas_src>

<mosaic_0001>
module attributes {stable_mosaic.version = 11 : i64} {
  func.func @_residual_layer_kernel(%arg0: i32, %arg1: i32, %arg2: memref<1x32x768xf32, #tpu.memory_space<vmem>>, %arg3: memref<2x32x96xf32, #tpu.memory_space<vmem>>, %arg4: memref<2x32x1xf32, #tpu.memory_space<vmem>>, %arg5: memref<1x32x256xf32, #tpu.memory_space<vmem>>, %arg6: memref<32x776xf32, #tpu.memory_space<vmem>>) attributes {dimension_semantics = [#tpu.dimension_semantics<parallel>, #tpu.dimension_semantics<arbitrary>], iteration_bounds = array<i64: 2, 3>, scalar_prefetch = 0 : i64, scratch_operands = 1 : i64, tpu.core_type = #tpu.core_type<tc>, window_params = [{transform_indices = @transform_0, window_bounds = array<i64: 1, 32, 768>}, {pipeline_mode = #tpu.pipeline_mode<synchronous>, transform_indices = @transform_1, window_bounds = array<i64: 2, 32, 96>}, {pipeline_mode = #tpu.pipeline_mode<synchronous>, transform_indices = @transform_2, window_bounds = array<i64: 2, 32, 1>}, {transform_indices = @transform_3, window_bounds = array<i64: 1, 32, 256>}]} {
    %c0_i32 = arith.constant 0 : i32
    %0 = arith.cmpi eq, %arg1, %c0_i32 : i32
    %1 = arith.extui %0 : i1 to i32
    %c0_i32_0 = arith.constant 0 : i32
    %2 = arith.cmpi ne, %1, %c0_i32_0 : i32
    scf.if %2 {
      %cst_24 = arith.constant 0.000000e+00 : f32
      %60 = vector.broadcast %cst_24 : f32 to vector<32x4xf32>
      %c0_25 = arith.constant 0 : index
      %c0_26 = arith.constant 0 : index
      %61 = vector.load %arg6[%c0_25, %c0_26] : memref<32x776xf32, #tpu.memory_space<vmem>>, vector<32x4xf32>
      tpu.vector_store %arg6[%c0_25, %c0_26], %60 {strides = array<i32>} : memref<32x776xf32, #tpu.memory_space<vmem>>, vector<32x4xf32>,
      %cst_27 = arith.constant 0.000000e+00 : f32
      %62 = vector.broadcast %cst_27 : f32 to vector<32x4xf32>
      %c0_28 = arith.constant 0 : index
      %c772 = arith.constant 772 : index
      %63 = vector.load %arg6[%c0_28, %c772] : memref<32x776xf32, #tpu.memory_space<vmem>>, vector<32x4xf32>
      tpu.vector_store %arg6[%c0_28, %c772], %62 {strides = array<i32>} : memref<32x776xf32, #tpu.memory_space<vmem>>, vector<32x4xf32>,
      %c0_29 = arith.constant 0 : index
      %c0_30 = arith.constant 0 : index
      %c0_31 = arith.constant 0 : index
      %64 = vector.load %arg2[%c0_29, %c0_30, %c0_31] : memref<1x32x768xf32, #tpu.memory_space<vmem>>, vector<1x32x768xf32>
      %65 = vector.shape_cast %64 : vector<1x32x768xf32> to vector<32x768xf32>
      %c0_32 = arith.constant 0 : index
      %c4 = arith.constant 4 : index
      %66 = vector.load %arg6[%c0_32, %c4] : memref<32x776xf32, #tpu.memory_space<vmem>>, vector<32x768xf32>
      tpu.vector_store %arg6[%c0_32, %c4], %65 {strides = array<i32>} : memref<32x776xf32, #tpu.memory_space<vmem>>, vector<32x768xf32>,
    } else {
    }
    %c256_i32 = arith.constant 256 : i32
    %3 = arith.muli %arg1, %c256_i32 : i32
    %4 = tpu.assume_multiple %3, 256 : i32
    %c0 = arith.constant 0 : index
    %5 = arith.index_cast %4 : i32 to index
    %6 = vector.load %arg6[%c0, %5] : memref<32x776xf32, #tpu.memory_space<vmem>>, vector<32x264xf32>
    %c4_i32 = arith.constant 4 : i32
    %7 = arith.subi %4, %c4_i32 : i32
    %cst = arith.constant 0.000000e+00 : f32
    %8 = vector.broadcast %cst : f32 to vector<32x264xf32>
    %9 = arith.cmpf ogt, %6, %8 : vector<32x264xf32>
    %cst_1 = arith.constant 2.000000e-01 : f32
    %10 = vector.broadcast %cst_1 : f32 to vector<32x264xf32>
    %11 = arith.mulf %10, %6 : vector<32x264xf32>
    %12 = arith.select %9, %6, %11 : vector<32x264xi1>, vector<32x264xf32>
    %13 = vector.extract_strided_slice %12 {offsets = [0, 0], sizes = [32, 262], strides = [1, 1]} : vector<32x264xf32> to vector<32x262xf32>
    %14 = vector.extract_strided_slice %12 {offsets = [0, 1], sizes = [32, 262], strides = [1, 1]} : vector<32x264xf32> to vector<32x262xf32>
    %15 = vector.extract_strided_slice %12 {offsets = [0, 2], sizes = [32, 262], strides = [1, 1]} : vector<32x264xf32> to vector<32x262xf32>
    %16 = tpu.concatenate %13, %14, %15 in 0 : vector<32x262xf32>, vector<32x262xf32>, vector<32x262xf32> -> vector<96x262xf32>
    %c0_2 = arith.constant 0 : index
    %c0_3 = arith.constant 0 : index
    %c0_4 = arith.constant 0 : index
    %17 = vector.load %arg3[%c0_2, %c0_3, %c0_4] : memref<2x32x96xf32, #tpu.memory_space<vmem>>, vector<1x32x96xf32>
    %18 = vector.shape_cast %17 : vector<1x32x96xf32> to vector<32x96xf32>
    %cst_5 = arith.constant dense<0.000000e+00> : vector<32x262xf32>
    %19 = tpu.matmul %18, %16, %cst_5 {dimension_numbers = #tpu.dot_dimension_numbers<[1], [0], [0], [1], [0, 0, 1, 1], [], []>} : vector<32x96xf32>, vector<96x262xf32>, vector<32x262xf32> -> vector<32x262xf32>
    %c0_6 = arith.constant 0 : index
    %c0_7 = arith.constant 0 : index
    %c0_8 = arith.constant 0 : index
    %20 = vector.load %arg4[%c0_6, %c0_7, %c0_8] : memref<2x32x1xf32, #tpu.memory_space<vmem>>, vector<1x32x1xf32>
    %21 = vector.shape_cast %20 : vector<1x32x1xf32> to vector<32x1xf32>
    %22 = vector.broadcast %21 : vector<32x1xf32> to vector<32x262xf32>
    %23 = arith.addf %19, %22 : vector<32x262xf32>
    %c1_i32 = arith.constant 1 : i32
    %24 = arith.addi %7, %c1_i32 : i32
    %cst_9 = arith.constant 0.000000e+00 : f32
    %25 = vector.broadcast %cst_9 : f32 to vector<32x262xf32>
    %26 = arith.cmpf ogt, %23, %25 : vector<32x262xf32>
    %cst_10 = arith.constant 2.000000e-01 : f32
    %27 = vector.broadcast %cst_10 : f32 to vector<32x262xf32>
    %28 = arith.mulf %27, %23 : vector<32x262xf32>
    %29 = arith.select %26, %23, %28 : vector<32x262xi1>, vector<32x262xf32>
    %30 = tpu.iota {dimensions = array<i32: 1>} : vector<1x262xi32>
    %31 = vector.broadcast %24 : i32 to vector<1x262xi32>
    %32 = arith.addi %31, %30 : vector<1x262xi32>
    %c0_i32_11 = arith.constant 0 : i32
    %33 = vector.broadcast %c0_i32_11 : i32 to vector<1x262xi32>
    %34 = arith.cmpi sge, %32, %33 : vector<1x262xi32>
    %c768_i32 = arith.constant 768 : i32
    %35 = vector.broadcast %c768_i32 : i32 to vector<1x262xi32>
    %36 = arith.cmpi slt, %32, %35 : vector<1x262xi32>
    %37 = arith.andi %34, %36 : vector<1x262xi1>
    %cst_12 = arith.constant 0.000000e+00 : f32
    %38 = vector.shape_cast %37 : vector<1x262xi1> to vector<1x262xi1>
    %39 = vector.broadcast %38 : vector<1x262xi1> to vector<32x262xi1>
    %40 = vector.broadcast %cst_12 : f32 to vector<32x262xf32>
    %41 = arith.select %39, %29, %40 : vector<32x262xi1>, vector<32x262xf32>
    %42 = vector.extract_strided_slice %41 {offsets = [0, 0], sizes = [32, 256], strides = [1, 1]} : vector<32x262xf32> to vector<32x256xf32>
    %43 = vector.extract_strided_slice %41 {offsets = [0, 3], sizes = [32, 256], strides = [1, 1]} : vector<32x262xf32> to vector<32x256xf32>
    %44 = vector.extract_strided_slice %41 {offsets = [0, 6], sizes = [32, 256], strides = [1, 1]} : vector<32x262xf32> to vector<32x256xf32>
    %45 = tpu.concatenate %42, %43, %44 in 0 : vector<32x256xf32>, vector<32x256xf32>, vector<32x256xf32> -> vector<96x256xf32>
    %c1 = arith.constant 1 : index
    %c0_13 = arith.constant 0 : index
    %c0_14 = arith.constant 0 : index
    %46 = vector.load %arg3[%c1, %c0_13, %c0_14] : memref<2x32x96xf32, #tpu.memory_space<vmem>>, vector<1x32x96xf32>
    %47 = vector.shape_cast %46 : vector<1x32x96xf32> to vector<32x96xf32>
    %cst_15 = arith.constant dense<0.000000e+00> : vector<32x256xf32>
    %48 = tpu.matmul %47, %45, %cst_15 {dimension_numbers = #tpu.dot_dimension_numbers<[1], [0], [0], [1], [0, 0, 1, 1], [], []>} : vector<32x96xf32>, vector<96x256xf32>, vector<32x256xf32> -> vector<32x256xf32>
    %c1_16 = arith.constant 1 : index
    %c0_17 = arith.constant 0 : index
    %c0_18 = arith.constant 0 : index
    %49 = vector.load %arg4[%c1_16, %c0_17, %c0_18] : memref<2x32x1xf32, #tpu.memory_space<vmem>>, vector<1x32x1xf32>
    %50 = vector.shape_cast %49 : vector<1x32x1xf32> to vector<32x1xf32>
    %51 = vector.broadcast %50 : vector<32x1xf32> to vector<32x256xf32>
    %52 = arith.addf %48, %51 : vector<32x256xf32>
    %c0_19 = arith.constant 0 : index
    %c0_20 = arith.constant 0 : index
    %53 = arith.index_cast %4 : i32 to index
    %54 = vector.load %arg2[%c0_19, %c0_20, %53] : memref<1x32x768xf32, #tpu.memory_space<vmem>>, vector<1x32x256xf32>
    %55 = vector.shape_cast %54 : vector<1x32x256xf32> to vector<32x256xf32>
    %56 = arith.addf %52, %55 : vector<32x256xf32>
    %c0_21 = arith.constant 0 : index
    %c0_22 = arith.constant 0 : index
    %c0_23 = arith.constant 0 : index
    %57 = vector.load %arg5[%c0_21, %c0_22, %c0_23] : memref<1x32x256xf32, #tpu.memory_space<vmem>>, vector<1x32x256xf32>
    %58 = vector.shape_cast %57 : vector<1x32x256xf32> to vector<32x256xf32>
    %59 = vector.shape_cast %56 : vector<32x256xf32> to vector<1x32x256xf32>
    tpu.vector_store %arg5[%c0_21, %c0_22, %c0_23], %59 {strides = array<i32>} : memref<1x32x256xf32, #tpu.memory_space<vmem>>, vector<1x32x256xf32>,
    return
  }
  func.func @transform_0(%arg0: i32, %arg1: i32) -> (i32, i32, i32) {
    %c0_i32 = arith.constant 0 : i32
    %c0_i32_0 = arith.constant 0 : i32
    %c0_i32_1 = arith.constant 0 : i32
    return %arg0, %c0_i32, %c0_i32_0 : i32, i32, i32
  }
  func.func @transform_1(%arg0: i32, %arg1: i32) -> (i32, i32, i32) {
    %c0_i32 = arith.constant 0 : i32
    %c0_i32_0 = arith.constant 0 : i32
    %c0_i32_1 = arith.constant 0 : i32
    %c0_i32_2 = arith.constant 0 : i32
    return %c0_i32, %c0_i32_0, %c0_i32_1 : i32, i32, i32
  }
  func.func @transform_2(%arg0: i32, %arg1: i32) -> (i32, i32, i32) {
    %c0_i32 = arith.constant 0 : i32
    %c0_i32_0 = arith.constant 0 : i32
    %c0_i32_1 = arith.constant 0 : i32
    %c0_i32_2 = arith.constant 0 : i32
    return %c0_i32, %c0_i32_0, %c0_i32_1 : i32, i32, i32
  }
  func.func @transform_3(%arg0: i32, %arg1: i32) -> (i32, i32, i32) {
    %c0_i32 = arith.constant 0 : i32
    %c0_i32_0 = arith.constant 0 : i32
    return %arg0, %c0_i32, %arg1 : i32, i32, i32
  }
}

module attributes {stable_mosaic.version = 11 : i64} {
  func.func @_residual_layer_kernel(%arg0: i32, %arg1: i32, %arg2: memref<1x32x768xf32, #tpu.memory_space<vmem>>, %arg3: memref<3x32x96xf32, #tpu.memory_space<vmem>>, %arg4: memref<3x32x1xf32, #tpu.memory_space<vmem>>, %arg5: memref<1x32x256xf32, #tpu.memory_space<vmem>>, %arg6: memref<32x794xf32, #tpu.memory_space<vmem>>) attributes {dimension_semantics = [#tpu.dimension_semantics<parallel>, #tpu.dimension_semantics<arbitrary>], iteration_bounds = array<i64: 2, 3>, scalar_prefetch = 0 : i64, scratch_operands = 1 : i64, tpu.core_type = #tpu.core_type<tc>, window_params = [{transform_indices = @transform_0, window_bounds = array<i64: 1, 32, 768>}, {pipeline_mode = #tpu.pipeline_mode<synchronous>, transform_indices = @transform_1, window_bounds = array<i64: 3, 32, 96>}, {pipeline_mode = #tpu.pipeline_mode<synchronous>, transform_indices = @transform_2, window_bounds = array<i64: 3, 32, 1>}, {transform_indices = @transform_3, window_bounds = array<i64: 1, 32, 256>}]} {
    %c0_i32 = arith.constant 0 : i32
    %0 = arith.cmpi eq, %arg1, %c0_i32 : i32
    %1 = arith.extui %0 : i1 to i32
    %c0_i32_0 = arith.constant 0 : i32
    %2 = arith.cmpi ne, %1, %c0_i32_0 : i32
    scf.if %2 {
      %cst_35 = arith.constant 0.000000e+00 : f32
      %89 = vector.broadcast %cst_35 : f32 to vector<32x13xf32>
      %c0_36 = arith.constant 0 : index
      %c0_37 = arith.constant 0 : index
      %90 = vector.load %arg6[%c0_36, %c0_37] : memref<32x794xf32, #tpu.memory_space<vmem>>, vector<32x13xf32>
      tpu.vector_store %arg6[%c0_36, %c0_37], %89 {strides = array<i32>} : memref<32x794xf32, #tpu.memory_space<vmem>>, vector<32x13xf32>,
      %cst_38 = arith.constant 0.000000e+00 : f32
      %91 = vector.broadcast %cst_38 : f32 to vector<32x13xf32>
      %c0_39 = arith.constant 0 : index
      %c781 = arith.constant 781 : index
      %92 = vector.load %arg6[%c0_39, %c781] : memref<32x794xf32, #tpu.memory_space<vmem>>, vector<32x13xf32>
      tpu.vector_store %arg6[%c0_39, %c781], %91 {strides = array<i32>} : memref<32x794xf32, #tpu.memory_space<vmem>>, vector<32x13xf32>,
      %c0_40 = arith.constant 0 : index
      %c0_41 = arith.constant 0 : index
      %c0_42 = arith.constant 0 : index
      %93 = vector.load %arg2[%c0_40, %c0_41, %c0_42] : memref<1x32x768xf32, #tpu.memory_space<vmem>>, vector<1x32x768xf32>
      %94 = vector.shape_cast %93 : vector<1x32x768xf32> to vector<32x768xf32>
      %c0_43 = arith.constant 0 : index
      %c13 = arith.constant 13 : index
      %95 = vector.load %arg6[%c0_43, %c13] : memref<32x794xf32, #tpu.memory_space<vmem>>, vector<32x768xf32>
      tpu.vector_store %arg6[%c0_43, %c13], %94 {strides = array<i32>} : memref<32x794xf32, #tpu.memory_space<vmem>>, vector<32x768xf32>,
    } else {
    }
    %c256_i32 = arith.constant 256 : i32
    %3 = arith.muli %arg1, %c256_i32 : i32
    %4 = tpu.assume_multiple %3, 256 : i32
    %c0 = arith.constant 0 : index
    %5 = arith.index_cast %4 : i32 to index
    %6 = vector.load %arg6[%c0, %5] : memref<32x794xf32, #tpu.memory_space<vmem>>, vector<32x282xf32>
    %c13_i32 = arith.constant 13 : i32
    %7 = arith.subi %4, %c13_i32 : i32
    %cst = arith.constant 0.000000e+00 : f32
    %8 = vector.broadcast %cst : f32 to vector<32x282xf32>
    %9 = arith.cmpf ogt, %6, %8 : vector<32x282xf32>
    %cst_1 = arith.constant 2.000000e-01 : f32
    %10 = vector.broadcast %cst_1 : f32 to vector<32x282xf32>
    %11 = arith.mulf %10, %6 : vector<32x282xf32>
    %12 = arith.select %9, %6, %11 : vector<32x282xi1>, vector<32x282xf32>
    %13 = vector.extract_strided_slice %12 {offsets = [0, 0], sizes = [32, 280], strides = [1, 1]} : vector<32x282xf32> to vector<32x280xf32>
    %14 = vector.extract_strided_slice %12 {offsets = [0, 1], sizes = [32, 280], strides = [1, 1]} : vector<32x282xf32> to vector<32x280xf32>
    %15 = vector.extract_strided_slice %12 {offsets = [0, 2], sizes = [32, 280], strides = [1, 1]} : vector<32x282xf32> to vector<32x280xf32>
    %16 = tpu.concatenate %13, %14, %15 in 0 : vector<32x280xf32>, vector<32x280xf32>, vector<32x280xf32> -> vector<96x280xf32>
    %c0_2 = arith.constant 0 : index
    %c0_3 = arith.constant 0 : index
    %c0_4 = arith.constant 0 : index
    %17 = vector.load %arg3[%c0_2, %c0_3, %c0_4] : memref<3x32x96xf32, #tpu.memory_space<vmem>>, vector<1x32x96xf32>
    %18 = vector.shape_cast %17 : vector<1x32x96xf32> to vector<32x96xf32>
    %cst_5 = arith.constant dense<0.000000e+00> : vector<32x280xf32>
    %19 = tpu.matmul %18, %16, %cst_5 {dimension_numbers = #tpu.dot_dimension_numbers<[1], [0], [0], [1], [0, 0, 1, 1], [], []>} : vector<32x96xf32>, vector<96x280xf32>, vector<32x280xf32> -> vector<32x280xf32>
    %c0_6 = arith.constant 0 : index
    %c0_7 = arith.constant 0 : index
    %c0_8 = arith.constant 0 : index
    %20 = vector.load %arg4[%c0_6, %c0_7, %c0_8] : memref<3x32x1xf32, #tpu.memory_space<vmem>>, vector<1x32x1xf32>
    %21 = vector.shape_cast %20 : vector<1x32x1xf32> to vector<32x1xf32>
    %22 = vector.broadcast %21 : vector<32x1xf32> to vector<32x280xf32>
    %23 = arith.addf %19, %22 : vector<32x280xf32>
    %c1_i32 = arith.constant 1 : i32
    %24 = arith.addi %7, %c1_i32 : i32
    %cst_9 = arith.constant 0.000000e+00 : f32
    %25 = vector.broadcast %cst_9 : f32 to vector<32x280xf32>
    %26 = arith.cmpf ogt, %23, %25 : vector<32x280xf32>
    %cst_10 = arith.constant 2.000000e-01 : f32
    %27 = vector.broadcast %cst_10 : f32 to vector<32x280xf32>
    %28 = arith.mulf %27, %23 : vector<32x280xf32>
    %29 = arith.select %26, %23, %28 : vector<32x280xi1>, vector<32x280xf32>
    %30 = tpu.iota {dimensions = array<i32: 1>} : vector<1x280xi32>
    %31 = vector.broadcast %24 : i32 to vector<1x280xi32>
    %32 = arith.addi %31, %30 : vector<1x280xi32>
    %c0_i32_11 = arith.constant 0 : i32
    %33 = vector.broadcast %c0_i32_11 : i32 to vector<1x280xi32>
    %34 = arith.cmpi sge, %32, %33 : vector<1x280xi32>
    %c768_i32 = arith.constant 768 : i32
    %35 = vector.broadcast %c768_i32 : i32 to vector<1x280xi32>
    %36 = arith.cmpi slt, %32, %35 : vector<1x280xi32>
    %37 = arith.andi %34, %36 : vector<1x280xi1>
    %cst_12 = arith.constant 0.000000e+00 : f32
    %38 = vector.shape_cast %37 : vector<1x280xi1> to vector<1x280xi1>
    %39 = vector.broadcast %38 : vector<1x280xi1> to vector<32x280xi1>
    %40 = vector.broadcast %cst_12 : f32 to vector<32x280xf32>
    %41 = arith.select %39, %29, %40 : vector<32x280xi1>, vector<32x280xf32>
    %42 = vector.extract_strided_slice %41 {offsets = [0, 0], sizes = [32, 274], strides = [1, 1]} : vector<32x280xf32> to vector<32x274xf32>
    %43 = vector.extract_strided_slice %41 {offsets = [0, 3], sizes = [32, 274], strides = [1, 1]} : vector<32x280xf32> to vector<32x274xf32>
    %44 = vector.extract_strided_slice %41 {offsets = [0, 6], sizes = [32, 274], strides = [1, 1]} : vector<32x280xf32> to vector<32x274xf32>
    %45 = tpu.concatenate %42, %43, %44 in 0 : vector<32x274xf32>, vector<32x274xf32>, vector<32x274xf32> -> vector<96x274xf32>
    %c1 = arith.constant 1 : index
    %c0_13 = arith.constant 0 : index
    %c0_14 = arith.constant 0 : index
    %46 = vector.load %arg3[%c1, %c0_13, %c0_14] : memref<3x32x96xf32, #tpu.memory_space<vmem>>, vector<1x32x96xf32>
    %47 = vector.shape_cast %46 : vector<1x32x96xf32> to vector<32x96xf32>
    %cst_15 = arith.constant dense<0.000000e+00> : vector<32x274xf32>
    %48 = tpu.matmul %47, %45, %cst_15 {dimension_numbers = #tpu.dot_dimension_numbers<[1], [0], [0], [1], [0, 0, 1, 1], [], []>} : vector<32x96xf32>, vector<96x274xf32>, vector<32x274xf32> -> vector<32x274xf32>
    %c1_16 = arith.constant 1 : index
    %c0_17 = arith.constant 0 : index
    %c0_18 = arith.constant 0 : index
    %49 = vector.load %arg4[%c1_16, %c0_17, %c0_18] : memref<3x32x1xf32, #tpu.memory_space<vmem>>, vector<1x32x1xf32>
    %50 = vector.shape_cast %49 : vector<1x32x1xf32> to vector<32x1xf32>
    %51 = vector.broadcast %50 : vector<32x1xf32> to vector<32x274xf32>
    %52 = arith.addf %48, %51 : vector<32x274xf32>
    %c3_i32 = arith.constant 3 : i32
    %53 = arith.addi %24, %c3_i32 : i32
    %cst_19 = arith.constant 0.000000e+00 : f32
    %54 = vector.broadcast %cst_19 : f32 to vector<32x274xf32>
    %55 = arith.cmpf ogt, %52, %54 : vector<32x274xf32>
    %cst_20 = arith.constant 2.000000e-01 : f32
    %56 = vector.broadcast %cst_20 : f32 to vector<32x274xf32>
    %57 = arith.mulf %56, %52 : vector<32x274xf32>
    %58 = arith.select %55, %52, %57 : vector<32x274xi1>, vector<32x274xf32>
    %59 = tpu.iota {dimensions = array<i32: 1>} : vector<1x274xi32>
    %60 = vector.broadcast %53 : i32 to vector<1x274xi32>
    %61 = arith.addi %60, %59 : vector<1x274xi32>
    %c0_i32_21 = arith.constant 0 : i32
    %62 = vector.broadcast %c0_i32_21 : i32 to vector<1x274xi32>
    %63 = arith.cmpi sge, %61, %62 : vector<1x274xi32>
    %c768_i32_22 = arith.constant 768 : i32
    %64 = vector.broadcast %c768_i32_22 : i32 to vector<1x274xi32>
    %65 = arith.cmpi slt, %61, %64 : vector<1x274xi32>
    %66 = arith.andi %63, %65 : vector<1x274xi1>
    %cst_23 = arith.constant 0.000000e+00 : f32
    %67 = vector.shape_cast %66 : vector<1x274xi1> to vector<1x274xi1>
    %68 = vector.broadcast %67 : vector<1x274xi1> to vector<32x274xi1>
    %69 = vector.broadcast %cst_23 : f32 to vector<32x274xf32>
    %70 = arith.select %68, %58, %69 : vector<32x274xi1>, vector<32x274xf32>
    %71 = vector.extract_strided_slice %70 {offsets = [0, 0], sizes = [32, 256], strides = [1, 1]} : vector<32x274xf32> to vector<32x256xf32>
    %72 = vector.extract_strided_slice %70 {offsets = [0, 9], sizes = [32, 256], strides = [1, 1]} : vector<32x274xf32> to vector<32x256xf32>
    %73 = vector.extract_strided_slice %70 {offsets = [0, 18], sizes = [32, 256], strides = [1, 1]} : vector<32x274xf32> to vector<32x256xf32>
    %74 = tpu.concatenate %71, %72, %73 in 0 : vector<32x256xf32>, vector<32x256xf32>, vector<32x256xf32> -> vector<96x256xf32>
    %c2 = arith.constant 2 : index
    %c0_24 = arith.constant 0 : index
    %c0_25 = arith.constant 0 : index
    %75 = vector.load %arg3[%c2, %c0_24, %c0_25] : memref<3x32x96xf32, #tpu.memory_space<vmem>>, vector<1x32x96xf32>
    %76 = vector.shape_cast %75 : vector<1x32x96xf32> to vector<32x96xf32>
    %cst_26 = arith.constant dense<0.000000e+00> : vector<32x256xf32>
    %77 = tpu.matmul %76, %74, %cst_26 {dimension_numbers = #tpu.dot_dimension_numbers<[1], [0], [0], [1], [0, 0, 1, 1], [], []>} : vector<32x96xf32>, vector<96x256xf32>, vector<32x256xf32> -> vector<32x256xf32>
    %c2_27 = arith.constant 2 : index
    %c0_28 = arith.constant 0 : index
    %c0_29 = arith.constant 0 : index
    %78 = vector.load %arg4[%c2_27, %c0_28, %c0_29] : memref<3x32x1xf32, #tpu.memory_space<vmem>>, vector<1x32x1xf32>
    %79 = vector.shape_cast %78 : vector<1x32x1xf32> to vector<32x1xf32>
    %80 = vector.broadcast %79 : vector<32x1xf32> to vector<32x256xf32>
    %81 = arith.addf %77, %80 : vector<32x256xf32>
    %c0_30 = arith.constant 0 : index
    %c0_31 = arith.constant 0 : index
    %82 = arith.index_cast %4 : i32 to index
    %83 = vector.load %arg2[%c0_30, %c0_31, %82] : memref<1x32x768xf32, #tpu.memory_space<vmem>>, vector<1x32x256xf32>
    %84 = vector.shape_cast %83 : vector<1x32x256xf32> to vector<32x256xf32>
    %85 = arith.addf %81, %84 : vector<32x256xf32>
    %c0_32 = arith.constant 0 : index
    %c0_33 = arith.constant 0 : index
    %c0_34 = arith.constant 0 : index
    %86 = vector.load %arg5[%c0_32, %c0_33, %c0_34] : memref<1x32x256xf32, #tpu.memory_space<vmem>>, vector<1x32x256xf32>
    %87 = vector.shape_cast %86 : vector<1x32x256xf32> to vector<32x256xf32>
    %88 = vector.shape_cast %85 : vector<32x256xf32> to vector<1x32x256xf32>
    tpu.vector_store %arg5[%c0_32, %c0_33, %c0_34], %88 {strides = array<i32>} : memref<1x32x256xf32, #tpu.memory_space<vmem>>, vector<1x32x256xf32>,
    return
  }
  func.func @transform_0(%arg0: i32, %arg1: i32) -> (i32, i32, i32) {
    %c0_i32 = arith.constant 0 : i32
    %c0_i32_0 = arith.constant 0 : i32
    %c0_i32_1 = arith.constant 0 : i32
    return %arg0, %c0_i32, %c0_i32_0 : i32, i32, i32
  }
  func.func @transform_1(%arg0: i32, %arg1: i32) -> (i32, i32, i32) {
    %c0_i32 = arith.constant 0 : i32
    %c0_i32_0 = arith.constant 0 : i32
    %c0_i32_1 = arith.constant 0 : i32
    %c0_i32_2 = arith.constant 0 : i32
    return %c0_i32, %c0_i32_0, %c0_i32_1 : i32, i32, i32
  }
  func.func @transform_2(%arg0: i32, %arg1: i32) -> (i32, i32, i32) {
    %c0_i32 = arith.constant 0 : i32
    %c0_i32_0 = arith.constant 0 : i32
    %c0_i32_1 = arith.constant 0 : i32
    %c0_i32_2 = arith.constant 0 : i32
    return %c0_i32, %c0_i32_0, %c0_i32_1 : i32, i32, i32
  }
  func.func @transform_3(%arg0: i32, %arg1: i32) -> (i32, i32, i32) {
    %c0_i32 = arith.constant 0 : i32
    %c0_i32_0 = arith.constant 0 : i32
    return %arg0, %c0_i32, %arg1 : i32, i32, i32
  }
}

</mosaic_0001>

<llo_original>
// kernel: residual_block_forward.2
$region0: #{residual_block_forward.2}
  #allocation0 [shape = 'u32[]', space=smem, size = 0x4, offset = 0x4, fixed_abs, tag = 'smem constant byte address 0x4 - core index']
  #allocation1 [shape = 'u32[144,128]{1,0:T(1,128)}', space=vmem, size = 0x12000, scoped, tag = 'internal scratch']
  #allocation2 [shape = 'f32[32,776]{1,0:T(8,128)}', space=vmem, size = 0x1c000, scoped, tag = 'scratch operand']
  %s0 = inlined_call_operand.hbm [shape: f32[2,32,768], index: 0, kind: input, shape index: {}]
  %s1 = inlined_call_operand.vmem [shape: f32[2,32,96], index: 1, kind: input, shape index: {}]
  %s2 = inlined_call_operand.vmem [shape: f32[2,32,1], index: 2, kind: input, shape index: {}]
  %s3 = inlined_call_operand.vmem [shape: f32[2,32,768], index: 3, kind: output, shape index: {}]
  %s4 = sld [smem:[#allocation0]]
  $region72: #{residual_block_forward.2} parent=0
    _
  %s6 = ssub.s32 1, %s4
  %s7 = scalar_select 0, %s6, %s4
  $region1: #{residual_block_forward.2} parent=0
    #allocation3 [shape = 'u8[196608]{0}', space=vmem, size = 0x30000, scoped, tag = 'input window, operand 0']
    #allocation4 [shape = 's32[2]{0}', space=sflag, size = 0x8, scoped, tag = 'scoped memory for residual_block_forward.2']
    #allocation5 [shape = 'u8[65536]{0}', space=vmem, size = 0x10000, scoped, tag = 'output window, operand 0']
    %8 = vsyncpa [#allocation4], 0
    %s9 = scalar_lea.sflag [#allocation4], 1
    %10 = vsyncpa %s9, 0
    loop: start=0, step=1, limit=8
    $region2: #{residual_block_forward.2} parent=1 // loop_pre_header
      _
    $region3: #{residual_block_forward.2} parent=1 // loop_header
      %s12 = sphi 0, %s16
      %p13 = scmp.ge.s32.totalorder %s12, 8
      %s19 = sphi 0, %s31
      %s20 = sphi 0, %s27
      %s21 = sphi 0, %s19
      %s22 = sphi 0, %s20
      %s23 = sphi 0, %s21
      %s24 = sphi 0, %s22
      %s34 = sphi 0, %s36
      %s37 = sphi 0, %s34
      %s38 = sphi 0, %s37
      %s54 = sphi 0, %s38
      %s58 = sphi 0, %s58
      %s60 = sphi 0, %s58
      %s61 = sphi 0, %s60
      %s75 = sphi 0, %s61
      %s79 = sphi 0, %s79
      %s81 = sphi 0, %s79
      %s82 = sphi 0, %s81
      %s96 = sphi 0, %s82
      %s104 = sphi 0, %s106
      %s107 = sphi 0, %s104
      %s108 = sphi 0, %s107
      %s124 = sphi 0, %s108
    $region4: #{residual_block_forward.2} parent=1 // loop_header_branch
      %15 = sbr.rel (%p13) target = $region8
    $region5: #{residual_block_forward.2} parent=1 // loop_body
      %s17 = ssub.s32 %s12, 1
      %s18 = ssub.s32 %s12, 2
      %s25 = sadd.s32 1, %s20
      %p26 = scmp.ge.s32.totalorder %s25, 3
      %s27 = scalar_select %p26, 0, %s25
      %s28 = sadd.s32 1, %s19
      %s29 = scalar_select %p26, %s28, %s19
      %p30 = scmp.ge.s32.totalorder %s29, 2
      %s31 = scalar_select %p30, 0, %s29
      %s32 = ssub.s32 %s19, %s31
      %p33 = scmp.eq.s32.totalorder %s32, 0
      %s35 = sadd.s32 %s34, 1
      %s36 = scalar_select %p33, %s34, %s35
      %p39 = pneg %p33
      %p40 = scmp.eq.s32.totalorder %s12, 5
      %p41 = por %p39, %p40
      %p42 = scmp.ne.s32.totalorder %s34, %s37
      %p43 = scmp.eq.s32.totalorder %s12, 0
      %p44 = por %p42, %p43
      %p45 = scmp.ne.s32.totalorder %s34, %s37
      %p46 = scmp.eq.s32.totalorder %s17, 5
      %p47 = por %p45, %p46
      %p48 = scmp.ne.s32.totalorder %s37, %s38
      %p49 = scmp.eq.s32.totalorder %s17, 0
      %p50 = por %p48, %p49
      %p51 = scmp.ne.s32.totalorder %s37, %s38
      %p52 = scmp.eq.s32.totalorder %s18, 5
      %p53 = por %p51, %p52
      %p55 = scmp.ne.s32.totalorder %s38, %s54
      %p56 = scmp.eq.s32.totalorder %s18, 0
      %p57 = por %p55, %p56
      %s59 = sadd.s32 %s58, 1
      %p62 = scmp.eq.s32.totalorder %s12, 5
      %p63 = scmp.ne.s32.totalorder %s58, %s60
      %p64 = scmp.eq.s32.totalorder %s12, 0
      %p65 = por %p63, %p64
      %p66 = scmp.ne.s32.totalorder %s58, %s60
      %p67 = scmp.eq.s32.totalorder %s17, 5
      %p68 = por %p66, %p67
      %p69 = scmp.ne.s32.totalorder %s60, %s61
      %p70 = scmp.eq.s32.totalorder %s17, 0
      %p71 = por %p69, %p70
      %p72 = scmp.ne.s32.totalorder %s60, %s61
      %p73 = scmp.eq.s32.totalorder %s18, 5
      %p74 = por %p72, %p73
      %p76 = scmp.ne.s32.totalorder %s61, %s75
      %p77 = scmp.eq.s32.totalorder %s18, 0
      %p78 = por %p76, %p77
      %s80 = sadd.s32 %s79, 1
      %p83 = scmp.eq.s32.totalorder %s12, 5
      %p84 = scmp.ne.s32.totalorder %s79, %s81
      %p85 = scmp.eq.s32.totalorder %s12, 0
      %p86 = por %p84, %p85
      %p87 = scmp.ne.s32.totalorder %s79, %s81
      %p88 = scmp.eq.s32.totalorder %s17, 5
      %p89 = por %p87, %p88
      %p90 = scmp.ne.s32.totalorder %s81, %s82
      %p91 = scmp.eq.s32.totalorder %s17, 0
      %p92 = por %p90, %p91
      %p93 = scmp.ne.s32.totalorder %s81, %s82
      %p94 = scmp.eq.s32.totalorder %s18, 5
      %p95 = por %p93, %p94
      %p97 = scmp.ne.s32.totalorder %s82, %s96
      %p98 = scmp.eq.s32.totalorder %s18, 0
      %p99 = por %p97, %p98
      %s100 = ssub.s32 %s19, %s31
      %s101 = ssub.s32 %s20, %s27
      %s102 = sor.u32 %s100, %s101
      %p103 = scmp.eq.s32.totalorder %s102, 0
      %s105 = sadd.s32 %s104, 1
      %s106 = scalar_select %p103, %s104, %s105
      %p109 = pneg %p103
      %p110 = scmp.eq.s32.totalorder %s12, 5
      %p111 = por %p109, %p110
      %p112 = scmp.ne.s32.totalorder %s104, %s107
      %p113 = scmp.eq.s32.totalorder %s12, 0
      %p114 = por %p112, %p113
      %p115 = scmp.ne.s32.totalorder %s104, %s107
      %p116 = scmp.eq.s32.totalorder %s17, 5
      %p117 = por %p115, %p116
      %p118 = scmp.ne.s32.totalorder %s107, %s108
      %p119 = scmp.eq.s32.totalorder %s17, 0
      %p120 = por %p118, %p119
      %p121 = scmp.ne.s32.totalorder %s107, %s108
      %p122 = scmp.eq.s32.totalorder %s18, 5
      %p123 = por %p121, %p122
      %p125 = scmp.ne.s32.totalorder %s108, %s124
      %p126 = scmp.eq.s32.totalorder %s18, 0
      %p127 = por %p125, %p126
      %p128 = scmp.le.s32.totalorder 1, %s12
      %p129 = scmp.lt.s32.totalorder %s12, 7
      %p130 = pnand %p128, %p129
      %p131 = pneg %p130
      // Predicated region
      $region9: #{residual_block_forward.2} parent=5 // pred_check
        _
      $region10: #{residual_block_forward.2} parent=5 // pred_check_branch
        %133 = sbr.rel (%p130) target = $region12
      $region11: #{residual_block_forward.2} parent=5 // pred_region
        %s134 = ssub.s32 %s12, 1
        // Predicated region
        $region13: #{residual_block_forward.2} parent=11 // pred_check
          %p135 = pneg %p71
        $region14: #{residual_block_forward.2} parent=11 // pred_check_branch
          %137 = sbr.rel (%p135) target = $region16
        $region15: #{residual_block_forward.2} parent=11 // pred_region
          _
        $region16: #{residual_block_forward.2} parent=11 // pred_fallthru
          _
        // Predicated region
        $region17: #{residual_block_forward.2} parent=11 // pred_check
          %p138 = pneg %p92
        $region18: #{residual_block_forward.2} parent=11 // pred_check_branch
          %140 = sbr.rel (%p138) target = $region20
        $region19: #{residual_block_forward.2} parent=11 // pred_region
          _
        $region20: #{residual_block_forward.2} parent=11 // pred_fallthru
          _
      $region12: #{residual_block_forward.2} parent=5 // pred_fallthru
        _
      %p141 = scmp.lt.s32.totalorder %s12, 6
      // Predicated region
      $region21: #{residual_block_forward.2} parent=5 // pred_check
        %p142 = pneg %p141
      $region22: #{residual_block_forward.2} parent=5 // pred_check_branch
        %144 = sbr.rel (%p142) target = $region24
      $region23: #{residual_block_forward.2} parent=5 // pred_region
        // Predicated region
        $region25: #{residual_block_forward.2} parent=23 // pred_check
          %p145 = pneg %p44
        $region26: #{residual_block_forward.2} parent=23 // pred_check_branch
          %147 = sbr.rel (%p145) target = $region28
        $region27: #{residual_block_forward.2} parent=23 // pred_region
          %s148 = sand.u32 %s34, 1
          %s149 = scalar_lea.sflag [#allocation4], %s148
          %s150 = sand.u32 %s34, 1
          %s151 = smul.addr %s150, 192
          %s152 = scalar_lea.vmem [#allocation3], %s151
          %s154 = ssub.s32 3072, 3072
          %155 = vsyncadd %s149, %s154
          %s156 = smul.addr %s19, 24
          %s157 = smul.addr %s156, 128
          %s158 = scalar_lea.hbm %s0, %s157
          %s159 = sshll.u32 %s152, 4
          %s160 = int_to_ptr.vmem [resolvable:$true] %s159
          %165 = dma.hbm_to_vmem [thread:$0]  %s158, 3072, %s160, %s149, 768, 768, 48
        $region28: #{residual_block_forward.2} parent=23 // pred_fallthru
          _
      $region24: #{residual_block_forward.2} parent=5 // pred_fallthru
        _
      %p166 = scmp.le.s32.totalorder 1, %s12
      %p167 = scmp.lt.s32.totalorder %s12, 7
      %p168 = pnand %p166, %p167
      %p169 = pneg %p168
      // Predicated region
      $region29: #{residual_block_forward.2} parent=5 // pred_check
        _
      $region30: #{residual_block_forward.2} parent=5 // pred_check_branch
        %171 = sbr.rel (%p168) target = $region32
      $region31: #{residual_block_forward.2} parent=5 // pred_region
        %s172 = ssub.s32 %s12, 1
        %s173 = sand.u32 %s37, 1
        %s174 = scalar_lea.sflag [#allocation4], %s173
        %s175 = sand.u32 %s37, 1
        %s176 = smul.addr %s175, 192
        %s177 = scalar_lea.vmem [#allocation3], %s176
        // Predicated region
        $region33: #{residual_block_forward.2} parent=31 // pred_check
          %p178 = pneg %p50
        $region34: #{residual_block_forward.2} parent=31 // pred_check_branch
          %180 = sbr.rel (%p178) target = $region36
        $region35: #{residual_block_forward.2} parent=31 // pred_region
          %181 = dma.done %s174, 3072
        $region36: #{residual_block_forward.2} parent=31 // pred_fallthru
          _
        %s182 = sand.u32 %s37, 1
        %s183 = scalar_lea.sflag [#allocation4], %s182
        %s184 = sand.u32 %s37, 1
        %s185 = smul.addr %s184, 192
        %s186 = scalar_lea.vmem [#allocation3], %s185
        %p187 = pneg %p50
        %p188 = pneg %p47
        %p189 = pneg %p71
        %p190 = pneg %p68
        %p191 = pneg %p92
        %p192 = pneg %p89
        %p193 = pneg %p120
        %p194 = pneg %p117
        %s195 = sand.u32 %s107, 1
        %s196 = sand.u32 %s107, 1
        %s197 = smul.addr %s196, 64
        %s198 = scalar_lea.vmem [#allocation5], %s197
        %s199 = smul.u32 2, %s22
        %p200 = scmp.eq.s32.totalorder %s22, 0
        // Predicated region
        $region37: #{residual_block_forward.2} parent=31 // pred_check
          %p201 = pneg %p200
        $region38: #{residual_block_forward.2} parent=31 // pred_check_branch
          %203 = sbr.rel (%p201) target = $region40
        $region39: #{residual_block_forward.2} parent=31 // pred_region
          %vm204 = vcmask 31744
          %205 = vst.msk [vmem:[#allocation2] sm:$0xff] %vm204, 0.0
          %206 = vst.msk [vmem:[#allocation2 + $0x38] sm:$0xff] %vm204, 0.0
          %207 = vst.msk [vmem:[#allocation2 + $0x70] sm:$0xff] %vm204, 0.0
          %208 = vst.msk [vmem:[#allocation2 + $0xa8] sm:$0xff] %vm204, 0.0
          %vm209 = vcmask 64544
          %210 = vst.msk [vmem:[#allocation2 + $0x30] sm:$0xff] %vm209, 0.0
          %211 = vst.msk [vmem:[#allocation2 + $0x68] sm:$0xff] %vm209, 0.0
          %212 = vst.msk [vmem:[#allocation2 + $0xa0] sm:$0xff] %vm209, 0.0
          %213 = vst.msk [vmem:[#allocation2 + $0xd8] sm:$0xff] %vm209, 0.0
          %v214 = vld [vmem:[%s177] sm:$0xff]
          %v215 = vld [vmem:[%s177 + $0x8] sm:$0xff]
          %v216 = vld [vmem:[%s177 + $0x10] sm:$0xff]
          %v217 = vld [vmem:[%s177 + $0x18] sm:$0xff]
          %v218 = vld [vmem:[%s177 + $0x20] sm:$0xff]
          %v219 = vld [vmem:[%s177 + $0x28] sm:$0xff]
          %v220 = vld [vmem:[%s177 + $0x30] sm:$0xff]
          %v221 = vld [vmem:[%s177 + $0x38] sm:$0xff]
          %v222 = vld [vmem:[%s177 + $0x40] sm:$0xff]
          %v223 = vld [vmem:[%s177 + $0x48] sm:$0xff]
          %v224 = vld [vmem:[%s177 + $0x50] sm:$0xff]
          %v225 = vld [vmem:[%s177 + $0x58] sm:$0xff]
          %v226 = vld [vmem:[%s177 + $0x60] sm:$0xff]
          %v227 = vld [vmem:[%s177 + $0x68] sm:$0xff]
          %v228 = vld [vmem:[%s177 + $0x70] sm:$0xff]
          %v229 = vld [vmem:[%s177 + $0x78] sm:$0xff]
          %v230 = vld [vmem:[%s177 + $0x80] sm:$0xff]
          %v231 = vld [vmem:[%s177 + $0x88] sm:$0xff]
          %v232 = vld [vmem:[%s177 + $0x90] sm:$0xff]
          %v233 = vld [vmem:[%s177 + $0x98] sm:$0xff]
          %v234 = vld [vmem:[%s177 + $0xa0] sm:$0xff]
          %v235 = vld [vmem:[%s177 + $0xa8] sm:$0xff]
          %v236 = vld [vmem:[%s177 + $0xb0] sm:$0xff]
          %v237 = vld [vmem:[%s177 + $0xb8] sm:$0xff]
          %262 = vrot.lane.b32.xlu0 %v214, 4
          %v263 = vpop.permute.xlu0 %262
          %264 = vrot.lane.b32.xlu0 %v215, 4
          %v265 = vpop.permute.xlu0 %264
          %266 = vrot.lane.b32.xlu0 %v216, 4
          %v267 = vpop.permute.xlu0 %266
          %268 = vrot.lane.b32.xlu0 %v217, 4
          %v269 = vpop.permute.xlu0 %268
          %270 = vrot.lane.b32.xlu0 %v218, 4
          %v271 = vpop.permute.xlu0 %270
          %272 = vrot.lane.b32.xlu0 %v219, 4
          %v273 = vpop.permute.xlu0 %272
          %274 = vrot.lane.b32.xlu0 %v220, 4
          %v275 = vpop.permute.xlu0 %274
          %276 = vrot.lane.b32.xlu0 %v221, 4
          %v277 = vpop.permute.xlu0 %276
          %278 = vrot.lane.b32.xlu0 %v222, 4
          %v279 = vpop.permute.xlu0 %278
          %280 = vrot.lane.b32.xlu0 %v223, 4
          %v281 = vpop.permute.xlu0 %280
          %282 = vrot.lane.b32.xlu0 %v224, 4
          %v283 = vpop.permute.xlu0 %282
          %284 = vrot.lane.b32.xlu0 %v225, 4
          %v285 = vpop.permute.xlu0 %284
          %286 = vrot.lane.b32.xlu0 %v226, 4
          %v287 = vpop.permute.xlu0 %286
          %288 = vrot.lane.b32.xlu0 %v227, 4
          %v289 = vpop.permute.xlu0 %288
          %290 = vrot.lane.b32.xlu0 %v228, 4
          %v291 = vpop.permute.xlu0 %290
          %292 = vrot.lane.b32.xlu0 %v229, 4
          %v293 = vpop.permute.xlu0 %292
          %294 = vrot.lane.b32.xlu0 %v230, 4
          %v295 = vpop.permute.xlu0 %294
          %296 = vrot.lane.b32.xlu0 %v231, 4
          %v297 = vpop.permute.xlu0 %296
          %298 = vrot.lane.b32.xlu0 %v232, 4
          %v299 = vpop.permute.xlu0 %298
          %300 = vrot.lane.b32.xlu0 %v233, 4
          %v301 = vpop.permute.xlu0 %300
          %302 = vrot.lane.b32.xlu0 %v234, 4
          %v303 = vpop.permute.xlu0 %302
          %304 = vrot.lane.b32.xlu0 %v235, 4
          %v305 = vpop.permute.xlu0 %304
          %306 = vrot.lane.b32.xlu0 %v236, 4
          %v307 = vpop.permute.xlu0 %306
          %308 = vrot.lane.b32.xlu0 %v237, 4
          %v309 = vpop.permute.xlu0 %308
          %v310 = vsel %vm204, %v263, %v265
          %v311 = vsel %vm204, %v265, %v267
          %v312 = vsel %vm204, %v267, %v269
          %v313 = vsel %vm204, %v269, %v271
          %v314 = vsel %vm204, %v271, %v273
          %v315 = vsel %vm204, %v275, %v277
          %v316 = vsel %vm204, %v277, %v279
          %v317 = vsel %vm204, %v279, %v281
          %v318 = vsel %vm204, %v281, %v283
          %v319 = vsel %vm204, %v283, %v285
          %v320 = vsel %vm204, %v287, %v289
          %v321 = vsel %vm204, %v289, %v291
          %v322 = vsel %vm204, %v291, %v293
          %v323 = vsel %vm204, %v293, %v295
          %v324 = vsel %vm204, %v295, %v297
          %v325 = vsel %vm204, %v299, %v301
          %v326 = vsel %vm204, %v301, %v303
          %v327 = vsel %vm204, %v303, %v305
          %v328 = vsel %vm204, %v305, %v307
          %v329 = vsel %vm204, %v307, %v309
          %vm358 = vcmask 1047584
          %359 = vst.msk [vmem:[#allocation2] sm:$0xff] %vm358, %v263
          %360 = vst [vmem:[#allocation2 + $0x8] sm:$0xff] %v310
          %361 = vst [vmem:[#allocation2 + $0x10] sm:$0xff] %v311
          %362 = vst [vmem:[#allocation2 + $0x18] sm:$0xff] %v312
          %363 = vst [vmem:[#allocation2 + $0x20] sm:$0xff] %v313
          %364 = vst [vmem:[#allocation2 + $0x28] sm:$0xff] %v314
          %365 = vst.msk [vmem:[#allocation2 + $0x30] sm:$0xff] %vm204, %v273
          %366 = vst.msk [vmem:[#allocation2 + $0x38] sm:$0xff] %vm358, %v275
          %367 = vst [vmem:[#allocation2 + $0x40] sm:$0xff] %v315
          %368 = vst [vmem:[#allocation2 + $0x48] sm:$0xff] %v316
          %369 = vst [vmem:[#allocation2 + $0x50] sm:$0xff] %v317
          %370 = vst [vmem:[#allocation2 + $0x58] sm:$0xff] %v318
          %371 = vst [vmem:[#allocation2 + $0x60] sm:$0xff] %v319
          %372 = vst.msk [vmem:[#allocation2 + $0x68] sm:$0xff] %vm204, %v285
          %373 = vst.msk [vmem:[#allocation2 + $0x70] sm:$0xff] %vm358, %v287
          %374 = vst [vmem:[#allocation2 + $0x78] sm:$0xff] %v320
          %375 = vst [vmem:[#allocation2 + $0x80] sm:$0xff] %v321
          %376 = vst [vmem:[#allocation2 + $0x88] sm:$0xff] %v322
          %377 = vst [vmem:[#allocation2 + $0x90] sm:$0xff] %v323
          %378 = vst [vmem:[#allocation2 + $0x98] sm:$0xff] %v324
          %379 = vst.msk [vmem:[#allocation2 + $0xa0] sm:$0xff] %vm204, %v297
          %380 = vst.msk [vmem:[#allocation2 + $0xa8] sm:$0xff] %vm358, %v299
          %381 = vst [vmem:[#allocation2 + $0xb0] sm:$0xff] %v325
          %382 = vst [vmem:[#allocation2 + $0xb8] sm:$0xff] %v326
          %383 = vst [vmem:[#allocation2 + $0xc0] sm:$0xff] %v327
          %384 = vst [vmem:[#allocation2 + $0xc8] sm:$0xff] %v328
          %385 = vst [vmem:[#allocation2 + $0xd0] sm:$0xff] %v329
          %386 = vst.msk [vmem:[#allocation2 + $0xd8] sm:$0xff] %vm204, %v309
        $region40: #{residual_block_forward.2} parent=31 // pred_fallthru
          _
        %s387 = smul.u32 %s22, 256
        %s388 = sshra.s32 %s387, 7
        %s389 = sand.u32 %s387, 127
        %s390 = smul.addr %s388, 8
        %s391 = scalar_lea.vmem [#allocation2], %s390
        %v392 = vld [vmem:[%s391] sm:$0xff]
        %v393 = vld [vmem:[%s391 + $0x8] sm:$0xff]
        %v394 = vld [vmem:[%s391 + $0x10] sm:$0xff]
        %v395 = vld [vmem:[%s391 + $0x38] sm:$0xff]
        %v396 = vld [vmem:[%s391 + $0x40] sm:$0xff]
        %v397 = vld [vmem:[%s391 + $0x48] sm:$0xff]
        %v398 = vld [vmem:[%s391 + $0x70] sm:$0xff]
        %v399 = vld [vmem:[%s391 + $0x78] sm:$0xff]
        %v400 = vld [vmem:[%s391 + $0x80] sm:$0xff]
        %v401 = vld [vmem:[%s391 + $0xa8] sm:$0xff]
        %v402 = vld [vmem:[%s391 + $0xb0] sm:$0xff]
        %v403 = vld [vmem:[%s391 + $0xb8] sm:$0xff]
        %vm404 = vcmp.gt.f32.partialorder %v392, 0.0
        %vm405 = vcmp.gt.f32.partialorder %v393, 0.0
        %vm406 = vcmp.gt.f32.partialorder %v394, 0.0
        %vm407 = vcmp.gt.f32.partialorder %v395, 0.0
        %vm408 = vcmp.gt.f32.partialorder %v396, 0.0
        %vm409 = vcmp.gt.f32.partialorder %v397, 0.0
        %vm410 = vcmp.gt.f32.partialorder %v398, 0.0
        %vm411 = vcmp.gt.f32.partialorder %v399, 0.0
        %vm412 = vcmp.gt.f32.partialorder %v400, 0.0
        %vm413 = vcmp.gt.f32.partialorder %v401, 0.0
        %vm414 = vcmp.gt.f32.partialorder %v402, 0.0
        %vm415 = vcmp.gt.f32.partialorder %v403, 0.0
        %v416 = vmul.f32 %v392, 0.2
        %v417 = vmul.f32 %v393, 0.2
        %v418 = vmul.f32 %v394, 0.2
        %v419 = vmul.f32 %v395, 0.2
        %v420 = vmul.f32 %v396, 0.2
        %v421 = vmul.f32 %v397, 0.2
        %v422 = vmul.f32 %v398, 0.2
        %v423 = vmul.f32 %v399, 0.2
        %v424 = vmul.f32 %v400, 0.2
        %v425 = vmul.f32 %v401, 0.2
        %v426 = vmul.f32 %v402, 0.2
        %v427 = vmul.f32 %v403, 0.2
        %v428 = vsel %vm404, %v392, %v416
        %v429 = vsel %vm405, %v393, %v417
        %v430 = vsel %vm406, %v394, %v418
        %v431 = vsel %vm407, %v395, %v419
        %v432 = vsel %vm408, %v396, %v420
        %v433 = vsel %vm409, %v397, %v421
        %v434 = vsel %vm410, %v398, %v422
        %v435 = vsel %vm411, %v399, %v423
        %v436 = vsel %vm412, %v400, %v424
        %v437 = vsel %vm413, %v401, %v425
        %v438 = vsel %vm414, %v402, %v426
        %v439 = vsel %vm415, %v403, %v427
        %452 = vrot.lane.b32.xlu0 %v428, 127
        %v453 = vpop.permute.xlu0 %452
        %454 = vrot.lane.b32.xlu0 %v429, 127
        %v455 = vpop.permute.xlu0 %454
        %456 = vrot.lane.b32.xlu0 %v430, 127
        %v457 = vpop.permute.xlu0 %456
        %458 = vrot.lane.b32.xlu0 %v431, 127
        %v459 = vpop.permute.xlu0 %458
        %460 = vrot.lane.b32.xlu0 %v432, 127
        %v461 = vpop.permute.xlu0 %460
        %462 = vrot.lane.b32.xlu0 %v433, 127
        %v463 = vpop.permute.xlu0 %462
        %464 = vrot.lane.b32.xlu0 %v434, 127
        %v465 = vpop.permute.xlu0 %464
        %466 = vrot.lane.b32.xlu0 %v435, 127
        %v467 = vpop.permute.xlu0 %466
        %468 = vrot.lane.b32.xlu0 %v436, 127
        %v469 = vpop.permute.xlu0 %468
        %470 = vrot.lane.b32.xlu0 %v437, 127
        %v471 = vpop.permute.xlu0 %470
        %472 = vrot.lane.b32.xlu0 %v438, 127
        %v473 = vpop.permute.xlu0 %472
        %474 = vrot.lane.b32.xlu0 %v439, 127
        %v475 = vpop.permute.xlu0 %474
        %vm476 = vcmask 1039360
        %v477 = vsel %vm476, %v453, %v455
        %v478 = vsel %vm476, %v455, %v457
        %v479 = vsel %vm476, %v459, %v461
        %v480 = vsel %vm476, %v461, %v463
        %v481 = vsel %vm476, %v465, %v467
        %v482 = vsel %vm476, %v467, %v469
        %v483 = vsel %vm476, %v471, %v473
        %v484 = vsel %vm476, %v473, %v475
        %497 = vrot.lane.b32.xlu0 %v428, 126
        %v498 = vpop.permute.xlu0 %497
        %499 = vrot.lane.b32.xlu0 %v429, 126
        %v500 = vpop.permute.xlu0 %499
        %501 = vrot.lane.b32.xlu0 %v430, 126
        %v502 = vpop.permute.xlu0 %501
        %503 = vrot.lane.b32.xlu0 %v431, 126
        %v504 = vpop.permute.xlu0 %503
        %505 = vrot.lane.b32.xlu0 %v432, 126
        %v506 = vpop.permute.xlu0 %505
        %507 = vrot.lane.b32.xlu0 %v433, 126
        %v508 = vpop.permute.xlu0 %507
        %509 = vrot.lane.b32.xlu0 %v434, 126
        %v510 = vpop.permute.xlu0 %509
        %511 = vrot.lane.b32.xlu0 %v435, 126
        %v512 = vpop.permute.xlu0 %511
        %513 = vrot.lane.b32.xlu0 %v436, 126
        %v514 = vpop.permute.xlu0 %513
        %515 = vrot.lane.b32.xlu0 %v437, 126
        %v516 = vpop.permute.xlu0 %515
        %517 = vrot.lane.b32.xlu0 %v438, 126
        %v518 = vpop.permute.xlu0 %517
        %519 = vrot.lane.b32.xlu0 %v439, 126
        %v520 = vpop.permute.xlu0 %519
        %vm521 = vcmask 1031168
        %v522 = vsel %vm521, %v498, %v500
        %v523 = vsel %vm521, %v500, %v502
        %v524 = vsel %vm521, %v504, %v506
        %v525 = vsel %vm521, %v506, %v508
        %v526 = vsel %vm521, %v510, %v512
        %v527 = vsel %vm521, %v512, %v514
        %v528 = vsel %vm521, %v516, %v518
        %v529 = vsel %vm521, %v518, %v520
        %v542 = vld [vmem:[%s1] sm:$0xff]
        %v543 = vld [vmem:[%s1 + $0x8] sm:$0xff]
        %v544 = vld [vmem:[%s1 + $0x10] sm:$0xff]
        %v545 = vld [vmem:[%s1 + $0x18] sm:$0xff]
        %v546 = vld [vmem:[%s2] sm:$0xff]
        %v547 = vld [vmem:[%s2 + $0x8] sm:$0xff]
        %v548 = vld [vmem:[%s2 + $0x10] sm:$0xff]
        %v549 = vld [vmem:[%s2 + $0x18] sm:$0xff]
        %551 = vset.pattern.permute.xlu0 0
        %552 = vperm.xlu0 %551, %v546
        %v553 = vpop.permute.xlu0 %552
        %556 = vset.pattern.permute.xlu0 0
        %557 = vperm.xlu0 %556, %v547
        %v558 = vpop.permute.xlu0 %557
        %561 = vset.pattern.permute.xlu0 0
        %562 = vperm.xlu0 %561, %v548
        %v563 = vpop.permute.xlu0 %562
        %566 = vset.pattern.permute.xlu0 0
        %567 = vperm.xlu0 %566, %v549
        %v568 = vpop.permute.xlu0 %567
        %vm570 = vcmask 785408
        %v572 = vsel %vm570, %v542, 0
        %v575 = vsel %vm570, %v543, 0
        %v578 = vsel %vm570, %v544, 0
        %v581 = vsel %vm570, %v545, 0
        %583 = vmatprep.subr.mxu0 %v429
        %584 = vmatpush1.msra.mxu0 %v428
        %585 = vmatprep.subr.mxu0 %v432
        %586 = vmatpush1.msra.mxu0 %v431
        %587 = vmatprep.subr.mxu0 %v435
        %588 = vmatpush1.msra.mxu0 %v434
        %589 = vmatprep.subr.mxu0 %v438
        %590 = vmatpush1.msra.mxu0 %v437
        %591 = vmatprep.subr.mxu0 %v478
        %592 = vmatpush1.msra.mxu0 %v477
        %593 = vmatprep.subr.mxu0 %v480
        %594 = vmatpush1.msra.mxu0 %v479
        %595 = vmatprep.subr.mxu0 %v482
        %596 = vmatpush1.msra.mxu0 %v481
        %597 = vmatprep.subr.mxu0 %v484
        %598 = vmatpush1.msra.mxu0 %v483
        %599 = vmatprep.subr.mxu0 %v523
        %600 = vmatpush1.msra.mxu0 %v522
        %601 = vmatprep.subr.mxu0 %v525
        %602 = vmatpush1.msra.mxu0 %v524
        %603 = vmatprep.subr.mxu0 %v527
        %604 = vmatpush1.msra.mxu0 %v526
        %605 = vmatprep.subr.mxu0 %v529
        %606 = vmatpush1.msra.mxu0 %v528
        %607 = vmatprep.subr.mxu0 0.0
        %608 = vmatpush1.msra.mxu0 0.0
        %609 = vmatprep.subr.mxu0 0.0
        %610 = vmatpush1.msra.mxu0 0.0
        %611 = vmatprep.subr.mxu0 0.0
        %612 = vmatpush1.msra.mxu0 0.0
        %613 = vmatprep.subr.mxu0 0.0
        %614 = vmatpush1.msra.mxu0 0.0
        %615 = vmatprep.subr.mxu0 0.0
        %616 = vmatpush1.msra.mxu0 0.0
        %617 = vmatprep.subr.mxu0 0.0
        %618 = vmatpush1.msra.mxu0 0.0
        %619 = vmatprep.subr.mxu0 0.0
        %620 = vmatpush1.msra.mxu0 0.0
        %621 = vmatprep.subr.mxu0 0.0
        %622 = vmatpush1.msra.mxu0 0.0
        %623 = vmatprep.subr.mxu0 0.0
        %624 = vmatpush1.msra.mxu0 0.0
        %625 = vmatprep.subr.mxu0 0.0
        %626 = vmatpush1.msra.mxu0 0.0
        %627 = vmatprep.subr.mxu0 0.0
        %628 = vmatpush1.msra.mxu0 0.0
        %629 = vmatprep.subr.mxu0 0.0
        %630 = vmatpush1.msra.mxu0 0.0
        %631 = vmatprep.subr.mxu0 0.0
        %632 = vmatpush1.msra.mxu0 0.0
        %633 = vmatprep.subr.mxu0 0.0
        %634 = vmatpush1.msra.mxu0 0.0
        %635 = vmatprep.subr.mxu0 0.0
        %636 = vmatpush1.msra.mxu0 0.0
        %637 = vmatprep.subr.mxu0 0.0
        %638 = vmatpush1.msra.mxu0 0.0
        %639 = vmatprep.subr.mxu0 0.0
        %640 = vmatpush1.msra.mxu0 0.0
        %641 = vmatprep.subr.mxu0 0.0
        %642 = vmatpush1.msra.mxu0 0.0
        %643 = vmatprep.subr.mxu0 0.0
        %644 = vmatpush1.msra.mxu0 0.0
        %645 = vmatprep.subr.mxu0 0.0
        %646 = vmatpush1.msra.mxu0 0.0
        %647 = vmatprep.mubr.f32.mxu0 0.0
        %648 = vmatmul.mubr.f32.gmra.mrb[0].mxu0 %v572
        %v649 = vpop.f32.mrb[0].mxu0
        %v650 = vadd.f32 %v553, %v649
        %v651 = vpop.f32.mrb[0].mxu0
        %v652 = vadd.f32 %v553, %v651
        %653 = vmatprep.mubr.f32.mxu0 0.0
        %654 = vmatmul.mubr.f32.gmra.mrb[0].mxu0 %v575
        %v655 = vpop.f32.mrb[0].mxu0
        %v656 = vadd.f32 %v558, %v655
        %v657 = vpop.f32.mrb[0].mxu0
        %v658 = vadd.f32 %v558, %v657
        %659 = vmatprep.mubr.f32.mxu0 0.0
        %660 = vmatmul.mubr.f32.gmra.mrb[0].mxu0 %v578
        %v661 = vpop.f32.mrb[0].mxu0
        %v662 = vadd.f32 %v563, %v661
        %v663 = vpop.f32.mrb[0].mxu0
        %v664 = vadd.f32 %v563, %v663
        %665 = vmatprep.mubr.f32.mxu0 0.0
        %666 = vmatmul.mubr.f32.gmra.mrb[0].mxu0 %v581
        %v667 = vpop.f32.mrb[0].mxu0
        %v668 = vadd.f32 %v568, %v667
        %v669 = vpop.f32.mrb[0].mxu0
        %v670 = vadd.f32 %v568, %v669
        %671 = vdwg.mxu0
        %672 = vmatprep.subr.mxu0 0.0
        %673 = vmatpush1.msra.mxu0 %v430
        %674 = vmatprep.subr.mxu0 0.0
        %675 = vmatpush1.msra.mxu0 %v433
        %676 = vmatprep.subr.mxu0 0.0
        %677 = vmatpush1.msra.mxu0 %v436
        %678 = vmatprep.subr.mxu0 0.0
        %679 = vmatpush1.msra.mxu0 %v439
        %680 = vmatprep.subr.mxu0 0.0
        %681 = vmatpush1.msra.mxu0 %v457
        %682 = vmatprep.subr.mxu0 0.0
        %683 = vmatpush1.msra.mxu0 %v463
        %684 = vmatprep.subr.mxu0 0.0
        %685 = vmatpush1.msra.mxu0 %v469
        %686 = vmatprep.subr.mxu0 0.0
        %687 = vmatpush1.msra.mxu0 %v475
        %688 = vmatprep.subr.mxu0 0.0
        %689 = vmatpush1.msra.mxu0 %v502
        %690 = vmatprep.subr.mxu0 0.0
        %691 = vmatpush1.msra.mxu0 %v508
        %692 = vmatprep.subr.mxu0 0.0
        %693 = vmatpush1.msra.mxu0 %v514
        %694 = vmatprep.subr.mxu0 0.0
        %695 = vmatpush1.msra.mxu0 %v520
        %696 = vmatprep.subr.mxu0 0.0
        %697 = vmatpush1.msra.mxu0 0.0
        %698 = vmatprep.subr.mxu0 0.0
        %699 = vmatpush1.msra.mxu0 0.0
        %700 = vmatprep.subr.mxu0 0.0
        %701 = vmatpush1.msra.mxu0 0.0
        %702 = vmatprep.subr.mxu0 0.0
        %703 = vmatpush1.msra.mxu0 0.0
        %704 = vmatprep.subr.mxu0 0.0
        %705 = vmatpush1.msra.mxu0 0.0
        %706 = vmatprep.subr.mxu0 0.0
        %707 = vmatpush1.msra.mxu0 0.0
        %708 = vmatprep.subr.mxu0 0.0
        %709 = vmatpush1.msra.mxu0 0.0
        %710 = vmatprep.subr.mxu0 0.0
        %711 = vmatpush1.msra.mxu0 0.0
        %712 = vmatprep.subr.mxu0 0.0
        %713 = vmatpush1.msra.mxu0 0.0
        %714 = vmatprep.subr.mxu0 0.0
        %715 = vmatpush1.msra.mxu0 0.0
        %716 = vmatprep.subr.mxu0 0.0
        %717 = vmatpush1.msra.mxu0 0.0
        %718 = vmatprep.subr.mxu0 0.0
        %719 = vmatpush1.msra.mxu0 0.0
        %720 = vmatprep.subr.mxu0 0.0
        %721 = vmatpush1.msra.mxu0 0.0
        %722 = vmatprep.subr.mxu0 0.0
        %723 = vmatpush1.msra.mxu0 0.0
        %724 = vmatprep.subr.mxu0 0.0
        %725 = vmatpush1.msra.mxu0 0.0
        %726 = vmatprep.subr.mxu0 0.0
        %727 = vmatpush1.msra.mxu0 0.0
        %728 = vmatprep.subr.mxu0 0.0
        %729 = vmatpush1.msra.mxu0 0.0
        %730 = vmatprep.subr.mxu0 0.0
        %731 = vmatpush1.msra.mxu0 0.0
        %732 = vmatprep.subr.mxu0 0.0
        %733 = vmatpush1.msra.mxu0 0.0
        %734 = vmatprep.subr.mxu0 0.0
        %735 = vmatpush1.msra.mxu0 0.0
        %736 = vmatprep.mubr.f32.mxu0 0.0
        %737 = vmatmul.mubr.f32.gmra.mrb[0].mxu0 %v572
        %v738 = vpop.f32.mrb[0].mxu0
        %v739 = vadd.f32 %v553, %v738
        %v740 = vpop.f32.mrb[0].mxu0
        %741 = vmatprep.mubr.f32.mxu0 0.0
        %742 = vmatmul.mubr.f32.gmra.mrb[0].mxu0 %v575
        %v743 = vpop.f32.mrb[0].mxu0
        %v744 = vadd.f32 %v558, %v743
        %v745 = vpop.f32.mrb[0].mxu0
        %746 = vmatprep.mubr.f32.mxu0 0.0
        %747 = vmatmul.mubr.f32.gmra.mrb[0].mxu0 %v578
        %v748 = vpop.f32.mrb[0].mxu0
        %v749 = vadd.f32 %v563, %v748
        %v750 = vpop.f32.mrb[0].mxu0
        %751 = vmatprep.mubr.f32.mxu0 0.0
        %752 = vmatmul.mubr.f32.gmra.mrb[0].mxu0 %v581
        %v753 = vpop.f32.mrb[0].mxu0
        %v754 = vadd.f32 %v568, %v753
        %v755 = vpop.f32.mrb[0].mxu0
        %756 = vdwg.mxu0
        %s757 = sadd.s32 %s387, 4294967293
        %vm758 = vcmp.gt.f32.partialorder %v650, 0.0
        %vm759 = vcmp.gt.f32.partialorder %v652, 0.0
        %vm760 = vcmp.gt.f32.partialorder %v739, 0.0
        %vm761 = vcmp.gt.f32.partialorder %v656, 0.0
        %vm762 = vcmp.gt.f32.partialorder %v658, 0.0
        %vm763 = vcmp.gt.f32.partialorder %v744, 0.0
        %vm764 = vcmp.gt.f32.partialorder %v662, 0.0
        %vm765 = vcmp.gt.f32.partialorder %v664, 0.0
        %vm766 = vcmp.gt.f32.partialorder %v749, 0.0
        %vm767 = vcmp.gt.f32.partialorder %v668, 0.0
        %vm768 = vcmp.gt.f32.partialorder %v670, 0.0
        %vm769 = vcmp.gt.f32.partialorder %v754, 0.0
        %v770 = vmul.f32 %v650, 0.2
        %v771 = vmul.f32 %v652, 0.2
        %v772 = vmul.f32 %v739, 0.2
        %v773 = vmul.f32 %v656, 0.2
        %v774 = vmul.f32 %v658, 0.2
        %v775 = vmul.f32 %v744, 0.2
        %v776 = vmul.f32 %v662, 0.2
        %v777 = vmul.f32 %v664, 0.2
        %v778 = vmul.f32 %v749, 0.2
        %v779 = vmul.f32 %v668, 0.2
        %v780 = vmul.f32 %v670, 0.2
        %v781 = vmul.f32 %v754, 0.2
        %v782 = vsel %vm758, %v650, %v770
        %v783 = vsel %vm759, %v652, %v771
        %v784 = vsel %vm760, %v739, %v772
        %v785 = vsel %vm761, %v656, %v773
        %v786 = vsel %vm762, %v658, %v774
        %v787 = vsel %vm763, %v744, %v775
        %v788 = vsel %vm764, %v662, %v776
        %v789 = vsel %vm765, %v664, %v777
        %v790 = vsel %vm766, %v749, %v778
        %v791 = vsel %vm767, %v668, %v779
        %v792 = vsel %vm768, %v670, %v780
        %v793 = vsel %vm769, %v754, %v781
        %v794 = vlaneseq
        %v795 = vand.u32 %v794, 127
        %v796 = vadd.s32 %v795, 128
        %v797 = vadd.s32 %v795, 256
        %v798 = vstv %s757
        %v799 = vadd.s32 %v798, %v795
        %v800 = vadd.s32 %v798, %v796
        %v801 = vadd.s32 %v798, %v797
        %vm802 = vcmp.ge.s32.totalorder %v799, 0
        %vm803 = vcmp.ge.s32.totalorder %v800, 0
        %vm804 = vcmp.ge.s32.totalorder %v801, 0
        %vm805 = vcmp.lt.s32.totalorder %v799, 768
        %vm806 = vcmp.lt.s32.totalorder %v800, 768
        %vm807 = vcmp.lt.s32.totalorder %v801, 768
        %vm808 = vmand %vm802, %vm805
        %vm809 = vmand %vm803, %vm806
        %vm810 = vmand %vm804, %vm807
        %v811 = vsel %vm808, 1, 0
        %v812 = vsel %vm809, 1, 0
        %v813 = vsel %vm810, 1, 0
        %vm814 = vcmp.eq.s32.totalorder %v811, 1
        %vm815 = vcmp.eq.s32.totalorder %v812, 1
        %vm816 = vcmp.eq.s32.totalorder %v813, 1
        %v817 = vsel %vm814, %v782, 0.0
        %v818 = vsel %vm815, %v783, 0.0
        %v819 = vsel %vm816, %v784, 0.0
        %v820 = vsel %vm814, %v785, 0.0
        %v821 = vsel %vm815, %v786, 0.0
        %v822 = vsel %vm816, %v787, 0.0
        %v823 = vsel %vm814, %v788, 0.0
        %v824 = vsel %vm815, %v789, 0.0
        %v825 = vsel %vm816, %v790, 0.0
        %v826 = vsel %vm814, %v791, 0.0
        %v827 = vsel %vm815, %v792, 0.0
        %v828 = vsel %vm816, %v793, 0.0
        %841 = vrot.lane.b32.xlu0 %v817, 125
        %v842 = vpop.permute.xlu0 %841
        %843 = vrot.lane.b32.xlu0 %v818, 125
        %v844 = vpop.permute.xlu0 %843
        %845 = vrot.lane.b32.xlu0 %v819, 125
        %v846 = vpop.permute.xlu0 %845
        %847 = vrot.lane.b32.xlu0 %v820, 125
        %v848 = vpop.permute.xlu0 %847
        %849 = vrot.lane.b32.xlu0 %v821, 125
        %v850 = vpop.permute.xlu0 %849
        %851 = vrot.lane.b32.xlu0 %v822, 125
        %v852 = vpop.permute.xlu0 %851
        %853 = vrot.lane.b32.xlu0 %v823, 125
        %v854 = vpop.permute.xlu0 %853
        %855 = vrot.lane.b32.xlu0 %v824, 125
        %v856 = vpop.permute.xlu0 %855
        %857 = vrot.lane.b32.xlu0 %v825, 125
        %v858 = vpop.permute.xlu0 %857
        %859 = vrot.lane.b32.xlu0 %v826, 125
        %v860 = vpop.permute.xlu0 %859
        %861 = vrot.lane.b32.xlu0 %v827, 125
        %v862 = vpop.permute.xlu0 %861
        %863 = vrot.lane.b32.xlu0 %v828, 125
        %v864 = vpop.permute.xlu0 %863
        %vm865 = vcmask 1022976
        %v866 = vsel %vm865, %v842, %v844
        %v867 = vsel %vm865, %v844, %v846
        %v868 = vsel %vm865, %v848, %v850
        %v869 = vsel %vm865, %v850, %v852
        %v870 = vsel %vm865, %v854, %v856
        %v871 = vsel %vm865, %v856, %v858
        %v872 = vsel %vm865, %v860, %v862
        %v873 = vsel %vm865, %v862, %v864
        %882 = vrot.lane.b32.xlu0 %v817, 122
        %v883 = vpop.permute.xlu0 %882
        %884 = vrot.lane.b32.xlu0 %v818, 122
        %v885 = vpop.permute.xlu0 %884
        %886 = vrot.lane.b32.xlu0 %v819, 122
        %v887 = vpop.permute.xlu0 %886
        %888 = vrot.lane.b32.xlu0 %v820, 122
        %v889 = vpop.permute.xlu0 %888
        %890 = vrot.lane.b32.xlu0 %v821, 122
        %v891 = vpop.permute.xlu0 %890
        %892 = vrot.lane.b32.xlu0 %v822, 122
        %v893 = vpop.permute.xlu0 %892
        %894 = vrot.lane.b32.xlu0 %v823, 122
        %v895 = vpop.permute.xlu0 %894
        %896 = vrot.lane.b32.xlu0 %v824, 122
        %v897 = vpop.permute.xlu0 %896
        %898 = vrot.lane.b32.xlu0 %v825, 122
        %v899 = vpop.permute.xlu0 %898
        %900 = vrot.lane.b32.xlu0 %v826, 122
        %v901 = vpop.permute.xlu0 %900
        %902 = vrot.lane.b32.xlu0 %v827, 122
        %v903 = vpop.permute.xlu0 %902
        %904 = vrot.lane.b32.xlu0 %v828, 122
        %v905 = vpop.permute.xlu0 %904
        %vm906 = vcmask 998400
        %v907 = vsel %vm906, %v883, %v885
        %v908 = vsel %vm906, %v885, %v887
        %v909 = vsel %vm906, %v889, %v891
        %v910 = vsel %vm906, %v891, %v893
        %v911 = vsel %vm906, %v895, %v897
        %v912 = vsel %vm906, %v897, %v899
        %v913 = vsel %vm906, %v901, %v903
        %v914 = vsel %vm906, %v903, %v905
        %s923 = scalar_lea.vmem %s1, 32
        %v924 = vld [vmem:[%s923] sm:$0xff]
        %v925 = vld [vmem:[%s923 + $0x8] sm:$0xff]
        %v926 = vld [vmem:[%s923 + $0x10] sm:$0xff]
        %v927 = vld [vmem:[%s923 + $0x18] sm:$0xff]
        %s928 = scalar_lea.vmem %s2, 32
        %v929 = vld [vmem:[%s928] sm:$0xff]
        %v930 = vld [vmem:[%s928 + $0x8] sm:$0xff]
        %v931 = vld [vmem:[%s928 + $0x10] sm:$0xff]
        %v932 = vld [vmem:[%s928 + $0x18] sm:$0xff]
        %934 = vset.pattern.permute.xlu0 0
        %935 = vperm.xlu0 %934, %v929
        %v936 = vpop.permute.xlu0 %935
        %939 = vset.pattern.permute.xlu0 0
        %940 = vperm.xlu0 %939, %v930
        %v941 = vpop.permute.xlu0 %940
        %944 = vset.pattern.permute.xlu0 0
        %945 = vperm.xlu0 %944, %v931
        %v946 = vpop.permute.xlu0 %945
        %949 = vset.pattern.permute.xlu0 0
        %950 = vperm.xlu0 %949, %v932
        %v951 = vpop.permute.xlu0 %950
        %v954 = vsel %vm570, %v924, 0
        %v957 = vsel %vm570, %v925, 0
        %v960 = vsel %vm570, %v926, 0
        %v963 = vsel %vm570, %v927, 0
        %965 = vmatprep.subr.mxu0 %v818
        %966 = vmatpush1.msra.mxu0 %v817
        %967 = vmatprep.subr.mxu0 %v821
        %968 = vmatpush1.msra.mxu0 %v820
        %969 = vmatprep.subr.mxu0 %v824
        %970 = vmatpush1.msra.mxu0 %v823
        %971 = vmatprep.subr.mxu0 %v827
        %972 = vmatpush1.msra.mxu0 %v826
        %973 = vmatprep.subr.mxu0 %v867
        %974 = vmatpush1.msra.mxu0 %v866
        %975 = vmatprep.subr.mxu0 %v869
        %976 = vmatpush1.msra.mxu0 %v868
        %977 = vmatprep.subr.mxu0 %v871
        %978 = vmatpush1.msra.mxu0 %v870
        %979 = vmatprep.subr.mxu0 %v873
        %980 = vmatpush1.msra.mxu0 %v872
        %981 = vmatprep.subr.mxu0 %v908
        %982 = vmatpush1.msra.mxu0 %v907
        %983 = vmatprep.subr.mxu0 %v910
        %984 = vmatpush1.msra.mxu0 %v909
        %985 = vmatprep.subr.mxu0 %v912
        %986 = vmatpush1.msra.mxu0 %v911
        %987 = vmatprep.subr.mxu0 %v914
        %988 = vmatpush1.msra.mxu0 %v913
        %989 = vmatprep.subr.mxu0 0.0
        %990 = vmatpush1.msra.mxu0 0.0
        %991 = vmatprep.subr.mxu0 0.0
        %992 = vmatpush1.msra.mxu0 0.0
        %993 = vmatprep.subr.mxu0 0.0
        %994 = vmatpush1.msra.mxu0 0.0
        %995 = vmatprep.subr.mxu0 0.0
        %996 = vmatpush1.msra.mxu0 0.0
        %997 = vmatprep.subr.mxu0 0.0
        %998 = vmatpush1.msra.mxu0 0.0
        %999 = vmatprep.subr.mxu0 0.0
        %1000 = vmatpush1.msra.mxu0 0.0
        %1001 = vmatprep.subr.mxu0 0.0
        %1002 = vmatpush1.msra.mxu0 0.0
        %1003 = vmatprep.subr.mxu0 0.0
        %1004 = vmatpush1.msra.mxu0 0.0
        %1005 = vmatprep.subr.mxu0 0.0
        %1006 = vmatpush1.msra.mxu0 0.0
        %1007 = vmatprep.subr.mxu0 0.0
        %1008 = vmatpush1.msra.mxu0 0.0
        %1009 = vmatprep.subr.mxu0 0.0
        %1010 = vmatpush1.msra.mxu0 0.0
        %1011 = vmatprep.subr.mxu0 0.0
        %1012 = vmatpush1.msra.mxu0 0.0
        %1013 = vmatprep.subr.mxu0 0.0
        %1014 = vmatpush1.msra.mxu0 0.0
        %1015 = vmatprep.subr.mxu0 0.0
        %1016 = vmatpush1.msra.mxu0 0.0
        %1017 = vmatprep.subr.mxu0 0.0
        %1018 = vmatpush1.msra.mxu0 0.0
        %1019 = vmatprep.subr.mxu0 0.0
        %1020 = vmatpush1.msra.mxu0 0.0
        %1021 = vmatprep.subr.mxu0 0.0
        %1022 = vmatpush1.msra.mxu0 0.0
        %1023 = vmatprep.subr.mxu0 0.0
        %1024 = vmatpush1.msra.mxu0 0.0
        %1025 = vmatprep.subr.mxu0 0.0
        %1026 = vmatpush1.msra.mxu0 0.0
        %1027 = vmatprep.subr.mxu0 0.0
        %1028 = vmatpush1.msra.mxu0 0.0
        %1029 = vmatprep.mubr.f32.mxu0 0.0
        %1030 = vmatmul.mubr.f32.gmra.mrb[0].mxu0 %v954
        %v1031 = vpop.f32.mrb[0].mxu0
        %v1032 = vadd.f32 %v936, %v1031
        %v1033 = vpop.f32.mrb[0].mxu0
        %v1034 = vadd.f32 %v936, %v1033
        %1035 = vmatprep.mubr.f32.mxu0 0.0
        %1036 = vmatmul.mubr.f32.gmra.mrb[0].mxu0 %v957
        %v1037 = vpop.f32.mrb[0].mxu0
        %v1038 = vadd.f32 %v941, %v1037
        %v1039 = vpop.f32.mrb[0].mxu0
        %v1040 = vadd.f32 %v941, %v1039
        %1041 = vmatprep.mubr.f32.mxu0 0.0
        %1042 = vmatmul.mubr.f32.gmra.mrb[0].mxu0 %v960
        %v1043 = vpop.f32.mrb[0].mxu0
        %v1044 = vadd.f32 %v946, %v1043
        %v1045 = vpop.f32.mrb[0].mxu0
        %v1046 = vadd.f32 %v946, %v1045
        %1047 = vmatprep.mubr.f32.mxu0 0.0
        %1048 = vmatmul.mubr.f32.gmra.mrb[0].mxu0 %v963
        %v1049 = vpop.f32.mrb[0].mxu0
        %v1050 = vadd.f32 %v951, %v1049
        %v1051 = vpop.f32.mrb[0].mxu0
        %v1052 = vadd.f32 %v951, %v1051
        %1053 = vdwg.mxu0
        %s1054 = smul.addr %s388, 8
        %s1055 = scalar_lea.vmem %s177, %s1054 [#allocation3]
        %v1056 = vld [vmem:[%s1055] sm:$0xff]
        %v1057 = vld [vmem:[%s1055 + $0x8] sm:$0xff]
        %v1058 = vld [vmem:[%s1055 + $0x30] sm:$0xff]
        %v1059 = vld [vmem:[%s1055 + $0x38] sm:$0xff]
        %v1060 = vld [vmem:[%s1055 + $0x60] sm:$0xff]
        %v1061 = vld [vmem:[%s1055 + $0x68] sm:$0xff]
        %v1062 = vld [vmem:[%s1055 + $0x90] sm:$0xff]
        %v1063 = vld [vmem:[%s1055 + $0x98] sm:$0xff]
        %v1064 = vadd.f32 %v1032, %v1056
        %v1065 = vadd.f32 %v1034, %v1057
        %v1066 = vadd.f32 %v1038, %v1058
        %v1067 = vadd.f32 %v1040, %v1059
        %v1068 = vadd.f32 %v1044, %v1060
        %v1069 = vadd.f32 %v1046, %v1061
        %v1070 = vadd.f32 %v1050, %v1062
        %v1071 = vadd.f32 %v1052, %v1063
        %1072 = vst [vmem:[%s198] sm:$0xff] %v1064
        %1073 = vst [vmem:[%s198 + $0x8] sm:$0xff] %v1065
        %1074 = vst [vmem:[%s198 + $0x10] sm:$0xff] %v1066
        %1075 = vst [vmem:[%s198 + $0x18] sm:$0xff] %v1067
        %1076 = vst [vmem:[%s198 + $0x20] sm:$0xff] %v1068
        %1077 = vst [vmem:[%s198 + $0x28] sm:$0xff] %v1069
        %1078 = vst [vmem:[%s198 + $0x30] sm:$0xff] %v1070
        %1079 = vst [vmem:[%s198 + $0x38] sm:$0xff] %v1071
        %s1080 = sand.u32 %s107, 1
        %s1081 = sand.u32 %s107, 1
        %s1082 = smul.addr %s1081, 64
        %s1083 = scalar_lea.vmem [#allocation5], %s1082
        // Predicated region
        $region41: #{residual_block_forward.2} parent=31 // pred_check
          %p1084 = pneg %p117
        $region42: #{residual_block_forward.2} parent=31 // pred_check_branch
          %1086 = sbr.rel (%p1084) target = $region44
        $region43: #{residual_block_forward.2} parent=31 // pred_region
          %s1087 = smul.u32 2, %s22
          %s1088 = smul.addr %s21, 24
          %s1089 = sadd.s32 %s1087, %s1088
          %s1090 = smul.addr %s1089, 8
          %s1091 = scalar_lea.vmem %s3, %s1090
          // Predicated region
          $region45: #{residual_block_forward.2} parent=43 // pred_check
            _
          $region46: #{residual_block_forward.2} parent=43 // pred_check_branch
            %1093 = sbr.rel (0) target = $region48
          $region47: #{residual_block_forward.2} parent=43 // pred_region
            // Predicated region
            $region49: #{residual_block_forward.2} parent=47 // pred_check
              _
            $region50: #{residual_block_forward.2} parent=47 // pred_check_branch
              %1095 = sbr.rel (0) target = $region52
            $region51: #{residual_block_forward.2} parent=47 // pred_region
              loop: start=0, step=1, limit=1
              $region53: #{residual_block_forward.2} parent=51 // loop_pre_header
                _
              $region54: #{residual_block_forward.2} parent=51 // loop_header
                %s1097 = sphi 0, %s1101
                %p1098 = scmp.ge.s32.totalorder %s1097, 1
                %s1102 = sphi %s1083, %s1083
                %s1103 = sphi %s1091, %s1091
              $region55: #{residual_block_forward.2} parent=51 // loop_header_branch
                %1100 = sbr.rel (%p1098) target = $region59
              $region56: #{residual_block_forward.2} parent=51 // loop_body
                %v1104 = vld [vmem:[%s1102] sm:$0xff]
                %1105 = vst [vmem:[%s1103] sm:$0xff] %v1104
                %v1106 = vld [vmem:[%s1102 + $0x8] sm:$0xff]
                %1107 = vst [vmem:[%s1103 + $0x8] sm:$0xff] %v1106
                %v1108 = vld [vmem:[%s1102 + $0x10] sm:$0xff]
                %1109 = vst [vmem:[%s1103 + $0x30] sm:$0xff] %v1108
                %v1110 = vld [vmem:[%s1102 + $0x18] sm:$0xff]
                %1111 = vst [vmem:[%s1103 + $0x38] sm:$0xff] %v1110
                %v1112 = vld [vmem:[%s1102 + $0x20] sm:$0xff]
                %1113 = vst [vmem:[%s1103 + $0x60] sm:$0xff] %v1112
                %v1114 = vld [vmem:[%s1102 + $0x28] sm:$0xff]
                %1115 = vst [vmem:[%s1103 + $0x68] sm:$0xff] %v1114
                %v1116 = vld [vmem:[%s1102 + $0x30] sm:$0xff]
                %1117 = vst [vmem:[%s1103 + $0x90] sm:$0xff] %v1116
                %v1118 = vld [vmem:[%s1102 + $0x38] sm:$0xff]
                %1119 = vst [vmem:[%s1103 + $0x98] sm:$0xff] %v1118
              $region57: #{residual_block_forward.2} parent=51 // loop_footer
                %s1101 = sadd.s32 1, %s1097
              $region58: #{residual_block_forward.2} parent=51 // loop_footer_branch
                %1096 = sbr.rel target = $region54
              $region59: #{residual_block_forward.2} parent=51 // loop_exit
                _
            $region52: #{residual_block_forward.2} parent=47 // pred_fallthru
              _
            // Predicated region
            $region60: #{residual_block_forward.2} parent=47 // pred_check
              _
            $region61: #{residual_block_forward.2} parent=47 // pred_check_branch
              %1121 = sbr.rel target = $region63
            $region62: #{residual_block_forward.2} parent=47 // pred_region
              _
            $region63: #{residual_block_forward.2} parent=47 // pred_fallthru
              _
          $region48: #{residual_block_forward.2} parent=43 // pred_fallthru
            _
          %1122 = vnop
        $region44: #{residual_block_forward.2} parent=31 // pred_fallthru
          _
      $region32: #{residual_block_forward.2} parent=5 // pred_fallthru
        _
      %p1123 = scmp.le.s32.totalorder 2, %s12
      // Predicated region
      $region64: #{residual_block_forward.2} parent=5 // pred_check
        %p1124 = pneg %p1123
      $region65: #{residual_block_forward.2} parent=5 // pred_check_branch
        %1126 = sbr.rel (%p1124) target = $region67
      $region66: #{residual_block_forward.2} parent=5 // pred_region
        %s1127 = ssub.s32 %s12, 2
        // Predicated region
        $region68: #{residual_block_forward.2} parent=66 // pred_check
          %p1128 = pneg %p123
        $region69: #{residual_block_forward.2} parent=66 // pred_check_branch
          %1130 = sbr.rel (%p1128) target = $region71
        $region70: #{residual_block_forward.2} parent=66 // pred_region
          %s1131 = sand.u32 %s108, 1
          %s1132 = sand.u32 %s108, 1
          %s1133 = smul.addr %s1132, 64
          %s1134 = scalar_lea.vmem [#allocation5], %s1133
        $region71: #{residual_block_forward.2} parent=66 // pred_fallthru
          _
      $region67: #{residual_block_forward.2} parent=5 // pred_fallthru
        _
    $region6: #{residual_block_forward.2} parent=1 // loop_footer
      %s16 = sadd.s32 1, %s12
    $region7: #{residual_block_forward.2} parent=1 // loop_footer_branch
      %11 = sbr.rel target = $region3
    $region8: #{residual_block_forward.2} parent=1 // loop_exit
      _
    %1135 = vsyncpa [#allocation4], 1
    %s1136 = scalar_lea.sflag [#allocation4], 1
    %1137 = vsyncpa %s1136, 1

// kernel: residual_block_forward.3
$region0: #{residual_block_forward.3}
  #allocation0 [shape = 'u32[]', space=smem, size = 0x4, offset = 0x4, fixed_abs, tag = 'smem constant byte address 0x4 - core index']
  #allocation1 [shape = 'u32[144,128]{1,0:T(1,128)}', space=vmem, size = 0x12000, scoped, tag = 'internal scratch']
  #allocation2 [shape = 'f32[32,794]{1,0:T(8,128)}', space=vmem, size = 0x1c000, scoped, tag = 'scratch operand']
  %s0 = inlined_call_operand.vmem [shape: f32[2,32,768], index: 0, kind: input, shape index: {}]
  %s1 = inlined_call_operand.vmem [shape: f32[3,32,96], index: 1, kind: input, shape index: {}]
  %s2 = inlined_call_operand.vmem [shape: f32[3,32,1], index: 2, kind: input, shape index: {}]
  %s3 = inlined_call_operand.hbm [shape: f32[2,32,768], index: 3, kind: output, shape index: {}]
  %s4 = sld [smem:[#allocation0]]
  $region49: #{residual_block_forward.3} parent=0
    _
  %s6 = ssub.s32 1, %s4
  %s7 = scalar_select 0, %s6, %s4
  $region1: #{residual_block_forward.3} parent=0
    #allocation3 [shape = 'u8[65536]{0}', space=vmem, size = 0x10000, scoped, tag = 'output window, operand 0']
    #allocation4 [shape = 's32[2]{0}', space=sflag, size = 0x8, scoped, tag = 'scoped memory for residual_block_forward.3']
    %8 = vsyncpa [#allocation4], 0
    %s9 = scalar_lea.sflag [#allocation4], 1
    %10 = vsyncpa %s9, 0
    loop: start=0, step=1, limit=8
    $region2: #{residual_block_forward.3} parent=1 // loop_pre_header
      _
    $region3: #{residual_block_forward.3} parent=1 // loop_header
      %s12 = sphi 0, %s16
      %p13 = scmp.ge.s32.totalorder %s12, 8
      %s19 = sphi 0, %s31
      %s20 = sphi 0, %s27
      %s21 = sphi 0, %s19
      %s22 = sphi 0, %s20
      %s23 = sphi 0, %s21
      %s24 = sphi 0, %s22
      %s34 = sphi 0, %s36
      %s37 = sphi 0, %s34
      %s38 = sphi 0, %s37
      %s54 = sphi 0, %s38
      %s58 = sphi 0, %s58
      %s60 = sphi 0, %s58
      %s61 = sphi 0, %s60
      %s75 = sphi 0, %s61
      %s79 = sphi 0, %s79
      %s81 = sphi 0, %s79
      %s82 = sphi 0, %s81
      %s96 = sphi 0, %s82
      %s104 = sphi 0, %s106
      %s107 = sphi 0, %s104
      %s108 = sphi 0, %s107
      %s124 = sphi 0, %s108
    $region4: #{residual_block_forward.3} parent=1 // loop_header_branch
      %15 = sbr.rel (%p13) target = $region8
    $region5: #{residual_block_forward.3} parent=1 // loop_body
      %s17 = ssub.s32 %s12, 1
      %s18 = ssub.s32 %s12, 2
      %s25 = sadd.s32 1, %s20
      %p26 = scmp.ge.s32.totalorder %s25, 3
      %s27 = scalar_select %p26, 0, %s25
      %s28 = sadd.s32 1, %s19
      %s29 = scalar_select %p26, %s28, %s19
      %p30 = scmp.ge.s32.totalorder %s29, 2
      %s31 = scalar_select %p30, 0, %s29
      %s32 = ssub.s32 %s19, %s31
      %p33 = scmp.eq.s32.totalorder %s32, 0
      %s35 = sadd.s32 %s34, 1
      %s36 = scalar_select %p33, %s34, %s35
      %p39 = pneg %p33
      %p40 = scmp.eq.s32.totalorder %s12, 5
      %p41 = por %p39, %p40
      %p42 = scmp.ne.s32.totalorder %s34, %s37
      %p43 = scmp.eq.s32.totalorder %s12, 0
      %p44 = por %p42, %p43
      %p45 = scmp.ne.s32.totalorder %s34, %s37
      %p46 = scmp.eq.s32.totalorder %s17, 5
      %p47 = por %p45, %p46
      %p48 = scmp.ne.s32.totalorder %s37, %s38
      %p49 = scmp.eq.s32.totalorder %s17, 0
      %p50 = por %p48, %p49
      %p51 = scmp.ne.s32.totalorder %s37, %s38
      %p52 = scmp.eq.s32.totalorder %s18, 5
      %p53 = por %p51, %p52
      %p55 = scmp.ne.s32.totalorder %s38, %s54
      %p56 = scmp.eq.s32.totalorder %s18, 0
      %p57 = por %p55, %p56
      %s59 = sadd.s32 %s58, 1
      %p62 = scmp.eq.s32.totalorder %s12, 5
      %p63 = scmp.ne.s32.totalorder %s58, %s60
      %p64 = scmp.eq.s32.totalorder %s12, 0
      %p65 = por %p63, %p64
      %p66 = scmp.ne.s32.totalorder %s58, %s60
      %p67 = scmp.eq.s32.totalorder %s17, 5
      %p68 = por %p66, %p67
      %p69 = scmp.ne.s32.totalorder %s60, %s61
      %p70 = scmp.eq.s32.totalorder %s17, 0
      %p71 = por %p69, %p70
      %p72 = scmp.ne.s32.totalorder %s60, %s61
      %p73 = scmp.eq.s32.totalorder %s18, 5
      %p74 = por %p72, %p73
      %p76 = scmp.ne.s32.totalorder %s61, %s75
      %p77 = scmp.eq.s32.totalorder %s18, 0
      %p78 = por %p76, %p77
      %s80 = sadd.s32 %s79, 1
      %p83 = scmp.eq.s32.totalorder %s12, 5
      %p84 = scmp.ne.s32.totalorder %s79, %s81
      %p85 = scmp.eq.s32.totalorder %s12, 0
      %p86 = por %p84, %p85
      %p87 = scmp.ne.s32.totalorder %s79, %s81
      %p88 = scmp.eq.s32.totalorder %s17, 5
      %p89 = por %p87, %p88
      %p90 = scmp.ne.s32.totalorder %s81, %s82
      %p91 = scmp.eq.s32.totalorder %s17, 0
      %p92 = por %p90, %p91
      %p93 = scmp.ne.s32.totalorder %s81, %s82
      %p94 = scmp.eq.s32.totalorder %s18, 5
      %p95 = por %p93, %p94
      %p97 = scmp.ne.s32.totalorder %s82, %s96
      %p98 = scmp.eq.s32.totalorder %s18, 0
      %p99 = por %p97, %p98
      %s100 = ssub.s32 %s19, %s31
      %s101 = ssub.s32 %s20, %s27
      %s102 = sor.u32 %s100, %s101
      %p103 = scmp.eq.s32.totalorder %s102, 0
      %s105 = sadd.s32 %s104, 1
      %s106 = scalar_select %p103, %s104, %s105
      %p109 = pneg %p103
      %p110 = scmp.eq.s32.totalorder %s12, 5
      %p111 = por %p109, %p110
      %p112 = scmp.ne.s32.totalorder %s104, %s107
      %p113 = scmp.eq.s32.totalorder %s12, 0
      %p114 = por %p112, %p113
      %p115 = scmp.ne.s32.totalorder %s104, %s107
      %p116 = scmp.eq.s32.totalorder %s17, 5
      %p117 = por %p115, %p116
      %p118 = scmp.ne.s32.totalorder %s107, %s108
      %p119 = scmp.eq.s32.totalorder %s17, 0
      %p120 = por %p118, %p119
      %p121 = scmp.ne.s32.totalorder %s107, %s108
      %p122 = scmp.eq.s32.totalorder %s18, 5
      %p123 = por %p121, %p122
      %p125 = scmp.ne.s32.totalorder %s108, %s124
      %p126 = scmp.eq.s32.totalorder %s18, 0
      %p127 = por %p125, %p126
      %p128 = scmp.le.s32.totalorder 1, %s12
      %p129 = scmp.lt.s32.totalorder %s12, 7
      %p130 = pnand %p128, %p129
      %p131 = pneg %p130
      // Predicated region
      $region9: #{residual_block_forward.3} parent=5 // pred_check
        _
      $region10: #{residual_block_forward.3} parent=5 // pred_check_branch
        %133 = sbr.rel (%p130) target = $region12
      $region11: #{residual_block_forward.3} parent=5 // pred_region
        %s134 = ssub.s32 %s12, 1
        // Predicated region
        $region13: #{residual_block_forward.3} parent=11 // pred_check
          %p135 = pneg %p71
        $region14: #{residual_block_forward.3} parent=11 // pred_check_branch
          %137 = sbr.rel (%p135) target = $region16
        $region15: #{residual_block_forward.3} parent=11 // pred_region
          _
        $region16: #{residual_block_forward.3} parent=11 // pred_fallthru
          _
        // Predicated region
        $region17: #{residual_block_forward.3} parent=11 // pred_check
          %p138 = pneg %p92
        $region18: #{residual_block_forward.3} parent=11 // pred_check_branch
          %140 = sbr.rel (%p138) target = $region20
        $region19: #{residual_block_forward.3} parent=11 // pred_region
          _
        $region20: #{residual_block_forward.3} parent=11 // pred_fallthru
          _
      $region12: #{residual_block_forward.3} parent=5 // pred_fallthru
        _
      %p141 = scmp.lt.s32.totalorder %s12, 6
      // Predicated region
      $region21: #{residual_block_forward.3} parent=5 // pred_check
        %p142 = pneg %p141
      $region22: #{residual_block_forward.3} parent=5 // pred_check_branch
        %144 = sbr.rel (%p142) target = $region24
      $region23: #{residual_block_forward.3} parent=5 // pred_region
        // Predicated region
        $region25: #{residual_block_forward.3} parent=23 // pred_check
          %p145 = pneg %p44
        $region26: #{residual_block_forward.3} parent=23 // pred_check_branch
          %147 = sbr.rel (%p145) target = $region28
        $region27: #{residual_block_forward.3} parent=23 // pred_region
          %p148 = scmp.lt.s32.totalorder %s19, 1
          %s149 = scalar_select %p148, %s19, 1
          %s150 = smul.addr %s149, 24
          %s151 = smul.addr %s150, 8
          %s152 = scalar_lea.vmem %s0, %s151
        $region28: #{residual_block_forward.3} parent=23 // pred_fallthru
          _
      $region24: #{residual_block_forward.3} parent=5 // pred_fallthru
        _
      %p153 = scmp.le.s32.totalorder 1, %s12
      %p154 = scmp.lt.s32.totalorder %s12, 7
      %p155 = pnand %p153, %p154
      %p156 = pneg %p155
      // Predicated region
      $region29: #{residual_block_forward.3} parent=5 // pred_check
        _
      $region30: #{residual_block_forward.3} parent=5 // pred_check_branch
        %158 = sbr.rel (%p155) target = $region32
      $region31: #{residual_block_forward.3} parent=5 // pred_region
        %s159 = ssub.s32 %s12, 1
        %p160 = scmp.lt.s32.totalorder %s21, 1
        %s161 = scalar_select %p160, %s21, 1
        %s162 = smul.addr %s161, 24
        %s163 = smul.addr %s162, 8
        %s164 = scalar_lea.vmem %s0, %s163
        %p165 = pneg %p50
        %p166 = pneg %p47
        %p167 = pneg %p71
        %p168 = pneg %p68
        %p169 = pneg %p92
        %p170 = pneg %p89
        %p171 = pneg %p120
        %p172 = pneg %p117
        %s173 = sand.u32 %s107, 1
        %s174 = scalar_lea.sflag [#allocation4], %s173
        %s175 = sand.u32 %s107, 1
        %s176 = smul.addr %s175, 64
        %s177 = scalar_lea.vmem [#allocation3], %s176
        %p178 = scmp.lt.s32.totalorder %s21, 1
        %s179 = scalar_select %p178, %s21, 1
        %s180 = smul.addr %s179, 24
        %s181 = smul.addr %s180, 8
        %s182 = scalar_lea.vmem %s0, %s181
        %s183 = smul.u32 2, %s22
        %p184 = scmp.eq.s32.totalorder %s22, 0
        // Predicated region
        $region33: #{residual_block_forward.3} parent=31 // pred_check
          %p185 = pneg %p184
        $region34: #{residual_block_forward.3} parent=31 // pred_check_branch
          %187 = sbr.rel (%p185) target = $region36
        $region35: #{residual_block_forward.3} parent=31 // pred_region
          %vm188 = vcmask 105472
          %189 = vst.msk [vmem:[#allocation2] sm:$0xff] %vm188, 0.0
          %190 = vst.msk [vmem:[#allocation2 + $0x38] sm:$0xff] %vm188, 0.0
          %191 = vst.msk [vmem:[#allocation2 + $0x70] sm:$0xff] %vm188, 0.0
          %192 = vst.msk [vmem:[#allocation2 + $0xa8] sm:$0xff] %vm188, 0.0
          %vm193 = vcmask 212072
          %194 = vst.msk [vmem:[#allocation2 + $0x30] sm:$0xff] %vm193, 0.0
          %195 = vst.msk [vmem:[#allocation2 + $0x68] sm:$0xff] %vm193, 0.0
          %196 = vst.msk [vmem:[#allocation2 + $0xa0] sm:$0xff] %vm193, 0.0
          %197 = vst.msk [vmem:[#allocation2 + $0xd8] sm:$0xff] %vm193, 0.0
          %v198 = vld [vmem:[%s182] sm:$0xff]
          %v199 = vld [vmem:[%s182 + $0x8] sm:$0xff]
          %v200 = vld [vmem:[%s182 + $0x10] sm:$0xff]
          %v201 = vld [vmem:[%s182 + $0x18] sm:$0xff]
          %v202 = vld [vmem:[%s182 + $0x20] sm:$0xff]
          %v203 = vld [vmem:[%s182 + $0x28] sm:$0xff]
          %v204 = vld [vmem:[%s182 + $0x30] sm:$0xff]
          %v205 = vld [vmem:[%s182 + $0x38] sm:$0xff]
          %v206 = vld [vmem:[%s182 + $0x40] sm:$0xff]
          %v207 = vld [vmem:[%s182 + $0x48] sm:$0xff]
          %v208 = vld [vmem:[%s182 + $0x50] sm:$0xff]
          %v209 = vld [vmem:[%s182 + $0x58] sm:$0xff]
          %v210 = vld [vmem:[%s182 + $0x60] sm:$0xff]
          %v211 = vld [vmem:[%s182 + $0x68] sm:$0xff]
          %v212 = vld [vmem:[%s182 + $0x70] sm:$0xff]
          %v213 = vld [vmem:[%s182 + $0x78] sm:$0xff]
          %v214 = vld [vmem:[%s182 + $0x80] sm:$0xff]
          %v215 = vld [vmem:[%s182 + $0x88] sm:$0xff]
          %v216 = vld [vmem:[%s182 + $0x90] sm:$0xff]
          %v217 = vld [vmem:[%s182 + $0x98] sm:$0xff]
          %v218 = vld [vmem:[%s182 + $0xa0] sm:$0xff]
          %v219 = vld [vmem:[%s182 + $0xa8] sm:$0xff]
          %v220 = vld [vmem:[%s182 + $0xb0] sm:$0xff]
          %v221 = vld [vmem:[%s182 + $0xb8] sm:$0xff]
          %246 = vrot.lane.b32.xlu0 %v198, 13
          %v247 = vpop.permute.xlu0 %246
          %248 = vrot.lane.b32.xlu0 %v199, 13
          %v249 = vpop.permute.xlu0 %248
          %250 = vrot.lane.b32.xlu0 %v200, 13
          %v251 = vpop.permute.xlu0 %250
          %252 = vrot.lane.b32.xlu0 %v201, 13
          %v253 = vpop.permute.xlu0 %252
          %254 = vrot.lane.b32.xlu0 %v202, 13
          %v255 = vpop.permute.xlu0 %254
          %256 = vrot.lane.b32.xlu0 %v203, 13
          %v257 = vpop.permute.xlu0 %256
          %258 = vrot.lane.b32.xlu0 %v204, 13
          %v259 = vpop.permute.xlu0 %258
          %260 = vrot.lane.b32.xlu0 %v205, 13
          %v261 = vpop.permute.xlu0 %260
          %262 = vrot.lane.b32.xlu0 %v206, 13
          %v263 = vpop.permute.xlu0 %262
          %264 = vrot.lane.b32.xlu0 %v207, 13
          %v265 = vpop.permute.xlu0 %264
          %266 = vrot.lane.b32.xlu0 %v208, 13
          %v267 = vpop.permute.xlu0 %266
          %268 = vrot.lane.b32.xlu0 %v209, 13
          %v269 = vpop.permute.xlu0 %268
          %270 = vrot.lane.b32.xlu0 %v210, 13
          %v271 = vpop.permute.xlu0 %270
          %272 = vrot.lane.b32.xlu0 %v211, 13
          %v273 = vpop.permute.xlu0 %272
          %274 = vrot.lane.b32.xlu0 %v212, 13
          %v275 = vpop.permute.xlu0 %274
          %276 = vrot.lane.b32.xlu0 %v213, 13
          %v277 = vpop.permute.xlu0 %276
          %278 = vrot.lane.b32.xlu0 %v214, 13
          %v279 = vpop.permute.xlu0 %278
          %280 = vrot.lane.b32.xlu0 %v215, 13
          %v281 = vpop.permute.xlu0 %280
          %282 = vrot.lane.b32.xlu0 %v216, 13
          %v283 = vpop.permute.xlu0 %282
          %284 = vrot.lane.b32.xlu0 %v217, 13
          %v285 = vpop.permute.xlu0 %284
          %286 = vrot.lane.b32.xlu0 %v218, 13
          %v287 = vpop.permute.xlu0 %286
          %288 = vrot.lane.b32.xlu0 %v219, 13
          %v289 = vpop.permute.xlu0 %288
          %290 = vrot.lane.b32.xlu0 %v220, 13
          %v291 = vpop.permute.xlu0 %290
          %292 = vrot.lane.b32.xlu0 %v221, 13
          %v293 = vpop.permute.xlu0 %292
          %v294 = vsel %vm188, %v247, %v249
          %v295 = vsel %vm188, %v249, %v251
          %v296 = vsel %vm188, %v251, %v253
          %v297 = vsel %vm188, %v253, %v255
          %v298 = vsel %vm188, %v255, %v257
          %v299 = vsel %vm188, %v259, %v261
          %v300 = vsel %vm188, %v261, %v263
          %v301 = vsel %vm188, %v263, %v265
          %v302 = vsel %vm188, %v265, %v267
          %v303 = vsel %vm188, %v267, %v269
          %v304 = vsel %vm188, %v271, %v273
          %v305 = vsel %vm188, %v273, %v275
          %v306 = vsel %vm188, %v275, %v277
          %v307 = vsel %vm188, %v277, %v279
          %v308 = vsel %vm188, %v279, %v281
          %v309 = vsel %vm188, %v283, %v285
          %v310 = vsel %vm188, %v285, %v287
          %v311 = vsel %vm188, %v287, %v289
          %v312 = vsel %vm188, %v289, %v291
          %v313 = vsel %vm188, %v291, %v293
          %vm342 = vcmask 1047656
          %343 = vst.msk [vmem:[#allocation2] sm:$0xff] %vm342, %v247
          %344 = vst [vmem:[#allocation2 + $0x8] sm:$0xff] %v294
          %345 = vst [vmem:[#allocation2 + $0x10] sm:$0xff] %v295
          %346 = vst [vmem:[#allocation2 + $0x18] sm:$0xff] %v296
          %347 = vst [vmem:[#allocation2 + $0x20] sm:$0xff] %v297
          %348 = vst [vmem:[#allocation2 + $0x28] sm:$0xff] %v298
          %349 = vst.msk [vmem:[#allocation2 + $0x30] sm:$0xff] %vm188, %v257
          %350 = vst.msk [vmem:[#allocation2 + $0x38] sm:$0xff] %vm342, %v259
          %351 = vst [vmem:[#allocation2 + $0x40] sm:$0xff] %v299
          %352 = vst [vmem:[#allocation2 + $0x48] sm:$0xff] %v300
          %353 = vst [vmem:[#allocation2 + $0x50] sm:$0xff] %v301
          %354 = vst [vmem:[#allocation2 + $0x58] sm:$0xff] %v302
          %355 = vst [vmem:[#allocation2 + $0x60] sm:$0xff] %v303
          %356 = vst.msk [vmem:[#allocation2 + $0x68] sm:$0xff] %vm188, %v269
          %357 = vst.msk [vmem:[#allocation2 + $0x70] sm:$0xff] %vm342, %v271
          %358 = vst [vmem:[#allocation2 + $0x78] sm:$0xff] %v304
          %359 = vst [vmem:[#allocation2 + $0x80] sm:$0xff] %v305
          %360 = vst [vmem:[#allocation2 + $0x88] sm:$0xff] %v306
          %361 = vst [vmem:[#allocation2 + $0x90] sm:$0xff] %v307
          %362 = vst [vmem:[#allocation2 + $0x98] sm:$0xff] %v308
          %363 = vst.msk [vmem:[#allocation2 + $0xa0] sm:$0xff] %vm188, %v281
          %364 = vst.msk [vmem:[#allocation2 + $0xa8] sm:$0xff] %vm342, %v283
          %365 = vst [vmem:[#allocation2 + $0xb0] sm:$0xff] %v309
          %366 = vst [vmem:[#allocation2 + $0xb8] sm:$0xff] %v310
          %367 = vst [vmem:[#allocation2 + $0xc0] sm:$0xff] %v311
          %368 = vst [vmem:[#allocation2 + $0xc8] sm:$0xff] %v312
          %369 = vst [vmem:[#allocation2 + $0xd0] sm:$0xff] %v313
          %370 = vst.msk [vmem:[#allocation2 + $0xd8] sm:$0xff] %vm188, %v293
        $region36: #{residual_block_forward.3} parent=31 // pred_fallthru
          _
        %s371 = smul.u32 %s22, 256
        %s372 = sshra.s32 %s371, 7
        %s373 = sand.u32 %s371, 127
        %s374 = smul.addr %s372, 8
        %s375 = scalar_lea.vmem [#allocation2], %s374
        %v376 = vld [vmem:[%s375] sm:$0xff]
        %v377 = vld [vmem:[%s375 + $0x8] sm:$0xff]
        %v378 = vld [vmem:[%s375 + $0x10] sm:$0xff]
        %v379 = vld [vmem:[%s375 + $0x38] sm:$0xff]
        %v380 = vld [vmem:[%s375 + $0x40] sm:$0xff]
        %v381 = vld [vmem:[%s375 + $0x48] sm:$0xff]
        %v382 = vld [vmem:[%s375 + $0x70] sm:$0xff]
        %v383 = vld [vmem:[%s375 + $0x78] sm:$0xff]
        %v384 = vld [vmem:[%s375 + $0x80] sm:$0xff]
        %v385 = vld [vmem:[%s375 + $0xa8] sm:$0xff]
        %v386 = vld [vmem:[%s375 + $0xb0] sm:$0xff]
        %v387 = vld [vmem:[%s375 + $0xb8] sm:$0xff]
        %vm388 = vcmp.gt.f32.partialorder %v376, 0.0
        %vm389 = vcmp.gt.f32.partialorder %v377, 0.0
        %vm390 = vcmp.gt.f32.partialorder %v378, 0.0
        %vm391 = vcmp.gt.f32.partialorder %v379, 0.0
        %vm392 = vcmp.gt.f32.partialorder %v380, 0.0
        %vm393 = vcmp.gt.f32.partialorder %v381, 0.0
        %vm394 = vcmp.gt.f32.partialorder %v382, 0.0
        %vm395 = vcmp.gt.f32.partialorder %v383, 0.0
        %vm396 = vcmp.gt.f32.partialorder %v384, 0.0
        %vm397 = vcmp.gt.f32.partialorder %v385, 0.0
        %vm398 = vcmp.gt.f32.partialorder %v386, 0.0
        %vm399 = vcmp.gt.f32.partialorder %v387, 0.0
        %v400 = vmul.f32 %v376, 0.2
        %v401 = vmul.f32 %v377, 0.2
        %v402 = vmul.f32 %v378, 0.2
        %v403 = vmul.f32 %v379, 0.2
        %v404 = vmul.f32 %v380, 0.2
        %v405 = vmul.f32 %v381, 0.2
        %v406 = vmul.f32 %v382, 0.2
        %v407 = vmul.f32 %v383, 0.2
        %v408 = vmul.f32 %v384, 0.2
        %v409 = vmul.f32 %v385, 0.2
        %v410 = vmul.f32 %v386, 0.2
        %v411 = vmul.f32 %v387, 0.2
        %v412 = vsel %vm388, %v376, %v400
        %v413 = vsel %vm389, %v377, %v401
        %v414 = vsel %vm390, %v378, %v402
        %v415 = vsel %vm391, %v379, %v403
        %v416 = vsel %vm392, %v380, %v404
        %v417 = vsel %vm393, %v381, %v405
        %v418 = vsel %vm394, %v382, %v406
        %v419 = vsel %vm395, %v383, %v407
        %v420 = vsel %vm396, %v384, %v408
        %v421 = vsel %vm397, %v385, %v409
        %v422 = vsel %vm398, %v386, %v410
        %v423 = vsel %vm399, %v387, %v411
        %436 = vrot.lane.b32.xlu0 %v412, 127
        %v437 = vpop.permute.xlu0 %436
        %438 = vrot.lane.b32.xlu0 %v413, 127
        %v439 = vpop.permute.xlu0 %438
        %440 = vrot.lane.b32.xlu0 %v414, 127
        %v441 = vpop.permute.xlu0 %440
        %442 = vrot.lane.b32.xlu0 %v415, 127
        %v443 = vpop.permute.xlu0 %442
        %444 = vrot.lane.b32.xlu0 %v416, 127
        %v445 = vpop.permute.xlu0 %444
        %446 = vrot.lane.b32.xlu0 %v417, 127
        %v447 = vpop.permute.xlu0 %446
        %448 = vrot.lane.b32.xlu0 %v418, 127
        %v449 = vpop.permute.xlu0 %448
        %450 = vrot.lane.b32.xlu0 %v419, 127
        %v451 = vpop.permute.xlu0 %450
        %452 = vrot.lane.b32.xlu0 %v420, 127
        %v453 = vpop.permute.xlu0 %452
        %454 = vrot.lane.b32.xlu0 %v421, 127
        %v455 = vpop.permute.xlu0 %454
        %456 = vrot.lane.b32.xlu0 %v422, 127
        %v457 = vpop.permute.xlu0 %456
        %458 = vrot.lane.b32.xlu0 %v423, 127
        %v459 = vpop.permute.xlu0 %458
        %vm460 = vcmask 1039360
        %v461 = vsel %vm460, %v437, %v439
        %v462 = vsel %vm460, %v439, %v441
        %v463 = vsel %vm460, %v443, %v445
        %v464 = vsel %vm460, %v445, %v447
        %v465 = vsel %vm460, %v449, %v451
        %v466 = vsel %vm460, %v451, %v453
        %v467 = vsel %vm460, %v455, %v457
        %v468 = vsel %vm460, %v457, %v459
        %481 = vrot.lane.b32.xlu0 %v412, 126
        %v482 = vpop.permute.xlu0 %481
        %483 = vrot.lane.b32.xlu0 %v413, 126
        %v484 = vpop.permute.xlu0 %483
        %485 = vrot.lane.b32.xlu0 %v414, 126
        %v486 = vpop.permute.xlu0 %485
        %487 = vrot.lane.b32.xlu0 %v415, 126
        %v488 = vpop.permute.xlu0 %487
        %489 = vrot.lane.b32.xlu0 %v416, 126
        %v490 = vpop.permute.xlu0 %489
        %491 = vrot.lane.b32.xlu0 %v417, 126
        %v492 = vpop.permute.xlu0 %491
        %493 = vrot.lane.b32.xlu0 %v418, 126
        %v494 = vpop.permute.xlu0 %493
        %495 = vrot.lane.b32.xlu0 %v419, 126
        %v496 = vpop.permute.xlu0 %495
        %497 = vrot.lane.b32.xlu0 %v420, 126
        %v498 = vpop.permute.xlu0 %497
        %499 = vrot.lane.b32.xlu0 %v421, 126
        %v500 = vpop.permute.xlu0 %499
        %501 = vrot.lane.b32.xlu0 %v422, 126
        %v502 = vpop.permute.xlu0 %501
        %503 = vrot.lane.b32.xlu0 %v423, 126
        %v504 = vpop.permute.xlu0 %503
        %vm505 = vcmask 1031168
        %v506 = vsel %vm505, %v482, %v484
        %v507 = vsel %vm505, %v484, %v486
        %v508 = vsel %vm505, %v488, %v490
        %v509 = vsel %vm505, %v490, %v492
        %v510 = vsel %vm505, %v494, %v496
        %v511 = vsel %vm505, %v496, %v498
        %v512 = vsel %vm505, %v500, %v502
        %v513 = vsel %vm505, %v502, %v504
        %v526 = vld [vmem:[%s1] sm:$0xff]
        %v527 = vld [vmem:[%s1 + $0x8] sm:$0xff]
        %v528 = vld [vmem:[%s1 + $0x10] sm:$0xff]
        %v529 = vld [vmem:[%s1 + $0x18] sm:$0xff]
        %v530 = vld [vmem:[%s2] sm:$0xff]
        %v531 = vld [vmem:[%s2 + $0x8] sm:$0xff]
        %v532 = vld [vmem:[%s2 + $0x10] sm:$0xff]
        %v533 = vld [vmem:[%s2 + $0x18] sm:$0xff]
        %535 = vset.pattern.permute.xlu0 0
        %536 = vperm.xlu0 %535, %v530
        %v537 = vpop.permute.xlu0 %536
        %540 = vset.pattern.permute.xlu0 0
        %541 = vperm.xlu0 %540, %v531
        %v542 = vpop.permute.xlu0 %541
        %545 = vset.pattern.permute.xlu0 0
        %546 = vperm.xlu0 %545, %v532
        %v547 = vpop.permute.xlu0 %546
        %550 = vset.pattern.permute.xlu0 0
        %551 = vperm.xlu0 %550, %v533
        %v552 = vpop.permute.xlu0 %551
        %vm554 = vcmask 785408
        %v556 = vsel %vm554, %v526, 0
        %v559 = vsel %vm554, %v527, 0
        %v562 = vsel %vm554, %v528, 0
        %v565 = vsel %vm554, %v529, 0
        %567 = vmatprep.subr.mxu0 %v413
        %568 = vmatpush1.msra.mxu0 %v412
        %569 = vmatprep.subr.mxu0 %v416
        %570 = vmatpush1.msra.mxu0 %v415
        %571 = vmatprep.subr.mxu0 %v419
        %572 = vmatpush1.msra.mxu0 %v418
        %573 = vmatprep.subr.mxu0 %v422
        %574 = vmatpush1.msra.mxu0 %v421
        %575 = vmatprep.subr.mxu0 %v462
        %576 = vmatpush1.msra.mxu0 %v461
        %577 = vmatprep.subr.mxu0 %v464
        %578 = vmatpush1.msra.mxu0 %v463
        %579 = vmatprep.subr.mxu0 %v466
        %580 = vmatpush1.msra.mxu0 %v465
        %581 = vmatprep.subr.mxu0 %v468
        %582 = vmatpush1.msra.mxu0 %v467
        %583 = vmatprep.subr.mxu0 %v507
        %584 = vmatpush1.msra.mxu0 %v506
        %585 = vmatprep.subr.mxu0 %v509
        %586 = vmatpush1.msra.mxu0 %v508
        %587 = vmatprep.subr.mxu0 %v511
        %588 = vmatpush1.msra.mxu0 %v510
        %589 = vmatprep.subr.mxu0 %v513
        %590 = vmatpush1.msra.mxu0 %v512
        %591 = vmatprep.subr.mxu0 0.0
        %592 = vmatpush1.msra.mxu0 0.0
        %593 = vmatprep.subr.mxu0 0.0
        %594 = vmatpush1.msra.mxu0 0.0
        %595 = vmatprep.subr.mxu0 0.0
        %596 = vmatpush1.msra.mxu0 0.0
        %597 = vmatprep.subr.mxu0 0.0
        %598 = vmatpush1.msra.mxu0 0.0
        %599 = vmatprep.subr.mxu0 0.0
        %600 = vmatpush1.msra.mxu0 0.0
        %601 = vmatprep.subr.mxu0 0.0
        %602 = vmatpush1.msra.mxu0 0.0
        %603 = vmatprep.subr.mxu0 0.0
        %604 = vmatpush1.msra.mxu0 0.0
        %605 = vmatprep.subr.mxu0 0.0
        %606 = vmatpush1.msra.mxu0 0.0
        %607 = vmatprep.subr.mxu0 0.0
        %608 = vmatpush1.msra.mxu0 0.0
        %609 = vmatprep.subr.mxu0 0.0
        %610 = vmatpush1.msra.mxu0 0.0
        %611 = vmatprep.subr.mxu0 0.0
        %612 = vmatpush1.msra.mxu0 0.0
        %613 = vmatprep.subr.mxu0 0.0
        %614 = vmatpush1.msra.mxu0 0.0
        %615 = vmatprep.subr.mxu0 0.0
        %616 = vmatpush1.msra.mxu0 0.0
        %617 = vmatprep.subr.mxu0 0.0
        %618 = vmatpush1.msra.mxu0 0.0
        %619 = vmatprep.subr.mxu0 0.0
        %620 = vmatpush1.msra.mxu0 0.0
        %621 = vmatprep.subr.mxu0 0.0
        %622 = vmatpush1.msra.mxu0 0.0
        %623 = vmatprep.subr.mxu0 0.0
        %624 = vmatpush1.msra.mxu0 0.0
        %625 = vmatprep.subr.mxu0 0.0
        %626 = vmatpush1.msra.mxu0 0.0
        %627 = vmatprep.subr.mxu0 0.0
        %628 = vmatpush1.msra.mxu0 0.0
        %629 = vmatprep.subr.mxu0 0.0
        %630 = vmatpush1.msra.mxu0 0.0
        %631 = vmatprep.mubr.f32.mxu0 0.0
        %632 = vmatmul.mubr.f32.gmra.mrb[0].mxu0 %v556
        %v633 = vpop.f32.mrb[0].mxu0
        %v634 = vadd.f32 %v537, %v633
        %v635 = vpop.f32.mrb[0].mxu0
        %v636 = vadd.f32 %v537, %v635
        %637 = vmatprep.mubr.f32.mxu0 0.0
        %638 = vmatmul.mubr.f32.gmra.mrb[0].mxu0 %v559
        %v639 = vpop.f32.mrb[0].mxu0
        %v640 = vadd.f32 %v542, %v639
        %v641 = vpop.f32.mrb[0].mxu0
        %v642 = vadd.f32 %v542, %v641
        %643 = vmatprep.mubr.f32.mxu0 0.0
        %644 = vmatmul.mubr.f32.gmra.mrb[0].mxu0 %v562
        %v645 = vpop.f32.mrb[0].mxu0
        %v646 = vadd.f32 %v547, %v645
        %v647 = vpop.f32.mrb[0].mxu0
        %v648 = vadd.f32 %v547, %v647
        %649 = vmatprep.mubr.f32.mxu0 0.0
        %650 = vmatmul.mubr.f32.gmra.mrb[0].mxu0 %v565
        %v651 = vpop.f32.mrb[0].mxu0
        %v652 = vadd.f32 %v552, %v651
        %v653 = vpop.f32.mrb[0].mxu0
        %v654 = vadd.f32 %v552, %v653
        %655 = vdwg.mxu0
        %656 = vmatprep.subr.mxu0 0.0
        %657 = vmatpush1.msra.mxu0 %v414
        %658 = vmatprep.subr.mxu0 0.0
        %659 = vmatpush1.msra.mxu0 %v417
        %660 = vmatprep.subr.mxu0 0.0
        %661 = vmatpush1.msra.mxu0 %v420
        %662 = vmatprep.subr.mxu0 0.0
        %663 = vmatpush1.msra.mxu0 %v423
        %664 = vmatprep.subr.mxu0 0.0
        %665 = vmatpush1.msra.mxu0 %v441
        %666 = vmatprep.subr.mxu0 0.0
        %667 = vmatpush1.msra.mxu0 %v447
        %668 = vmatprep.subr.mxu0 0.0
        %669 = vmatpush1.msra.mxu0 %v453
        %670 = vmatprep.subr.mxu0 0.0
        %671 = vmatpush1.msra.mxu0 %v459
        %672 = vmatprep.subr.mxu0 0.0
        %673 = vmatpush1.msra.mxu0 %v486
        %674 = vmatprep.subr.mxu0 0.0
        %675 = vmatpush1.msra.mxu0 %v492
        %676 = vmatprep.subr.mxu0 0.0
        %677 = vmatpush1.msra.mxu0 %v498
        %678 = vmatprep.subr.mxu0 0.0
        %679 = vmatpush1.msra.mxu0 %v504
        %680 = vmatprep.subr.mxu0 0.0
        %681 = vmatpush1.msra.mxu0 0.0
        %682 = vmatprep.subr.mxu0 0.0
        %683 = vmatpush1.msra.mxu0 0.0
        %684 = vmatprep.subr.mxu0 0.0
        %685 = vmatpush1.msra.mxu0 0.0
        %686 = vmatprep.subr.mxu0 0.0
        %687 = vmatpush1.msra.mxu0 0.0
        %688 = vmatprep.subr.mxu0 0.0
        %689 = vmatpush1.msra.mxu0 0.0
        %690 = vmatprep.subr.mxu0 0.0
        %691 = vmatpush1.msra.mxu0 0.0
        %692 = vmatprep.subr.mxu0 0.0
        %693 = vmatpush1.msra.mxu0 0.0
        %694 = vmatprep.subr.mxu0 0.0
        %695 = vmatpush1.msra.mxu0 0.0
        %696 = vmatprep.subr.mxu0 0.0
        %697 = vmatpush1.msra.mxu0 0.0
        %698 = vmatprep.subr.mxu0 0.0
        %699 = vmatpush1.msra.mxu0 0.0
        %700 = vmatprep.subr.mxu0 0.0
        %701 = vmatpush1.msra.mxu0 0.0
        %702 = vmatprep.subr.mxu0 0.0
        %703 = vmatpush1.msra.mxu0 0.0
        %704 = vmatprep.subr.mxu0 0.0
        %705 = vmatpush1.msra.mxu0 0.0
        %706 = vmatprep.subr.mxu0 0.0
        %707 = vmatpush1.msra.mxu0 0.0
        %708 = vmatprep.subr.mxu0 0.0
        %709 = vmatpush1.msra.mxu0 0.0
        %710 = vmatprep.subr.mxu0 0.0
        %711 = vmatpush1.msra.mxu0 0.0
        %712 = vmatprep.subr.mxu0 0.0
        %713 = vmatpush1.msra.mxu0 0.0
        %714 = vmatprep.subr.mxu0 0.0
        %715 = vmatpush1.msra.mxu0 0.0
        %716 = vmatprep.subr.mxu0 0.0
        %717 = vmatpush1.msra.mxu0 0.0
        %718 = vmatprep.subr.mxu0 0.0
        %719 = vmatpush1.msra.mxu0 0.0
        %720 = vmatprep.mubr.f32.mxu0 0.0
        %721 = vmatmul.mubr.f32.gmra.mrb[0].mxu0 %v556
        %v722 = vpop.f32.mrb[0].mxu0
        %v723 = vadd.f32 %v537, %v722
        %v724 = vpop.f32.mrb[0].mxu0
        %725 = vmatprep.mubr.f32.mxu0 0.0
        %726 = vmatmul.mubr.f32.gmra.mrb[0].mxu0 %v559
        %v727 = vpop.f32.mrb[0].mxu0
        %v728 = vadd.f32 %v542, %v727
        %v729 = vpop.f32.mrb[0].mxu0
        %730 = vmatprep.mubr.f32.mxu0 0.0
        %731 = vmatmul.mubr.f32.gmra.mrb[0].mxu0 %v562
        %v732 = vpop.f32.mrb[0].mxu0
        %v733 = vadd.f32 %v547, %v732
        %v734 = vpop.f32.mrb[0].mxu0
        %735 = vmatprep.mubr.f32.mxu0 0.0
        %736 = vmatmul.mubr.f32.gmra.mrb[0].mxu0 %v565
        %v737 = vpop.f32.mrb[0].mxu0
        %v738 = vadd.f32 %v552, %v737
        %v739 = vpop.f32.mrb[0].mxu0
        %740 = vdwg.mxu0
        %s741 = sadd.s32 %s371, 4294967284
        %vm742 = vcmp.gt.f32.partialorder %v634, 0.0
        %vm743 = vcmp.gt.f32.partialorder %v636, 0.0
        %vm744 = vcmp.gt.f32.partialorder %v723, 0.0
        %vm745 = vcmp.gt.f32.partialorder %v640, 0.0
        %vm746 = vcmp.gt.f32.partialorder %v642, 0.0
        %vm747 = vcmp.gt.f32.partialorder %v728, 0.0
        %vm748 = vcmp.gt.f32.partialorder %v646, 0.0
        %vm749 = vcmp.gt.f32.partialorder %v648, 0.0
        %vm750 = vcmp.gt.f32.partialorder %v733, 0.0
        %vm751 = vcmp.gt.f32.partialorder %v652, 0.0
        %vm752 = vcmp.gt.f32.partialorder %v654, 0.0
        %vm753 = vcmp.gt.f32.partialorder %v738, 0.0
        %v754 = vmul.f32 %v634, 0.2
        %v755 = vmul.f32 %v636, 0.2
        %v756 = vmul.f32 %v723, 0.2
        %v757 = vmul.f32 %v640, 0.2
        %v758 = vmul.f32 %v642, 0.2
        %v759 = vmul.f32 %v728, 0.2
        %v760 = vmul.f32 %v646, 0.2
        %v761 = vmul.f32 %v648, 0.2
        %v762 = vmul.f32 %v733, 0.2
        %v763 = vmul.f32 %v652, 0.2
        %v764 = vmul.f32 %v654, 0.2
        %v765 = vmul.f32 %v738, 0.2
        %v766 = vsel %vm742, %v634, %v754
        %v767 = vsel %vm743, %v636, %v755
        %v768 = vsel %vm744, %v723, %v756
        %v769 = vsel %vm745, %v640, %v757
        %v770 = vsel %vm746, %v642, %v758
        %v771 = vsel %vm747, %v728, %v759
        %v772 = vsel %vm748, %v646, %v760
        %v773 = vsel %vm749, %v648, %v761
        %v774 = vsel %vm750, %v733, %v762
        %v775 = vsel %vm751, %v652, %v763
        %v776 = vsel %vm752, %v654, %v764
        %v777 = vsel %vm753, %v738, %v765
        %v778 = vlaneseq
        %v779 = vand.u32 %v778, 127
        %v780 = vadd.s32 %v779, 128
        %v781 = vadd.s32 %v779, 256
        %v782 = vstv %s741
        %v783 = vadd.s32 %v782, %v779
        %v784 = vadd.s32 %v782, %v780
        %v785 = vadd.s32 %v782, %v781
        %vm786 = vcmp.ge.s32.totalorder %v783, 0
        %vm787 = vcmp.ge.s32.totalorder %v784, 0
        %vm788 = vcmp.ge.s32.totalorder %v785, 0
        %vm789 = vcmp.lt.s32.totalorder %v783, 768
        %vm790 = vcmp.lt.s32.totalorder %v784, 768
        %vm791 = vcmp.lt.s32.totalorder %v785, 768
        %vm792 = vmand %vm786, %vm789
        %vm793 = vmand %vm787, %vm790
        %vm794 = vmand %vm788, %vm791
        %v795 = vsel %vm792, 1, 0
        %v796 = vsel %vm793, 1, 0
        %v797 = vsel %vm794, 1, 0
        %vm798 = vcmp.eq.s32.totalorder %v795, 1
        %vm799 = vcmp.eq.s32.totalorder %v796, 1
        %vm800 = vcmp.eq.s32.totalorder %v797, 1
        %v801 = vsel %vm798, %v766, 0.0
        %v802 = vsel %vm799, %v767, 0.0
        %v803 = vsel %vm800, %v768, 0.0
        %v804 = vsel %vm798, %v769, 0.0
        %v805 = vsel %vm799, %v770, 0.0
        %v806 = vsel %vm800, %v771, 0.0
        %v807 = vsel %vm798, %v772, 0.0
        %v808 = vsel %vm799, %v773, 0.0
        %v809 = vsel %vm800, %v774, 0.0
        %v810 = vsel %vm798, %v775, 0.0
        %v811 = vsel %vm799, %v776, 0.0
        %v812 = vsel %vm800, %v777, 0.0
        %825 = vrot.lane.b32.xlu0 %v801, 125
        %v826 = vpop.permute.xlu0 %825
        %827 = vrot.lane.b32.xlu0 %v802, 125
        %v828 = vpop.permute.xlu0 %827
        %829 = vrot.lane.b32.xlu0 %v803, 125
        %v830 = vpop.permute.xlu0 %829
        %831 = vrot.lane.b32.xlu0 %v804, 125
        %v832 = vpop.permute.xlu0 %831
        %833 = vrot.lane.b32.xlu0 %v805, 125
        %v834 = vpop.permute.xlu0 %833
        %835 = vrot.lane.b32.xlu0 %v806, 125
        %v836 = vpop.permute.xlu0 %835
        %837 = vrot.lane.b32.xlu0 %v807, 125
        %v838 = vpop.permute.xlu0 %837
        %839 = vrot.lane.b32.xlu0 %v808, 125
        %v840 = vpop.permute.xlu0 %839
        %841 = vrot.lane.b32.xlu0 %v809, 125
        %v842 = vpop.permute.xlu0 %841
        %843 = vrot.lane.b32.xlu0 %v810, 125
        %v844 = vpop.permute.xlu0 %843
        %845 = vrot.lane.b32.xlu0 %v811, 125
        %v846 = vpop.permute.xlu0 %845
        %847 = vrot.lane.b32.xlu0 %v812, 125
        %v848 = vpop.permute.xlu0 %847
        %vm849 = vcmask 1022976
        %v850 = vsel %vm849, %v826, %v828
        %v851 = vsel %vm849, %v828, %v830
        %v852 = vsel %vm849, %v832, %v834
        %v853 = vsel %vm849, %v834, %v836
        %v854 = vsel %vm849, %v838, %v840
        %v855 = vsel %vm849, %v840, %v842
        %v856 = vsel %vm849, %v844, %v846
        %v857 = vsel %vm849, %v846, %v848
        %870 = vrot.lane.b32.xlu0 %v801, 122
        %v871 = vpop.permute.xlu0 %870
        %872 = vrot.lane.b32.xlu0 %v802, 122
        %v873 = vpop.permute.xlu0 %872
        %874 = vrot.lane.b32.xlu0 %v803, 122
        %v875 = vpop.permute.xlu0 %874
        %876 = vrot.lane.b32.xlu0 %v804, 122
        %v877 = vpop.permute.xlu0 %876
        %878 = vrot.lane.b32.xlu0 %v805, 122
        %v879 = vpop.permute.xlu0 %878
        %880 = vrot.lane.b32.xlu0 %v806, 122
        %v881 = vpop.permute.xlu0 %880
        %882 = vrot.lane.b32.xlu0 %v807, 122
        %v883 = vpop.permute.xlu0 %882
        %884 = vrot.lane.b32.xlu0 %v808, 122
        %v885 = vpop.permute.xlu0 %884
        %886 = vrot.lane.b32.xlu0 %v809, 122
        %v887 = vpop.permute.xlu0 %886
        %888 = vrot.lane.b32.xlu0 %v810, 122
        %v889 = vpop.permute.xlu0 %888
        %890 = vrot.lane.b32.xlu0 %v811, 122
        %v891 = vpop.permute.xlu0 %890
        %892 = vrot.lane.b32.xlu0 %v812, 122
        %v893 = vpop.permute.xlu0 %892
        %vm894 = vcmask 998400
        %v895 = vsel %vm894, %v871, %v873
        %v896 = vsel %vm894, %v873, %v875
        %v897 = vsel %vm894, %v877, %v879
        %v898 = vsel %vm894, %v879, %v881
        %v899 = vsel %vm894, %v883, %v885
        %v900 = vsel %vm894, %v885, %v887
        %v901 = vsel %vm894, %v889, %v891
        %v902 = vsel %vm894, %v891, %v893
        %s915 = scalar_lea.vmem %s1, 32
        %v916 = vld [vmem:[%s915] sm:$0xff]
        %v917 = vld [vmem:[%s915 + $0x8] sm:$0xff]
        %v918 = vld [vmem:[%s915 + $0x10] sm:$0xff]
        %v919 = vld [vmem:[%s915 + $0x18] sm:$0xff]
        %s920 = scalar_lea.vmem %s2, 32
        %v921 = vld [vmem:[%s920] sm:$0xff]
        %v922 = vld [vmem:[%s920 + $0x8] sm:$0xff]
        %v923 = vld [vmem:[%s920 + $0x10] sm:$0xff]
        %v924 = vld [vmem:[%s920 + $0x18] sm:$0xff]
        %926 = vset.pattern.permute.xlu0 0
        %927 = vperm.xlu0 %926, %v921
        %v928 = vpop.permute.xlu0 %927
        %931 = vset.pattern.permute.xlu0 0
        %932 = vperm.xlu0 %931, %v922
        %v933 = vpop.permute.xlu0 %932
        %936 = vset.pattern.permute.xlu0 0
        %937 = vperm.xlu0 %936, %v923
        %v938 = vpop.permute.xlu0 %937
        %941 = vset.pattern.permute.xlu0 0
        %942 = vperm.xlu0 %941, %v924
        %v943 = vpop.permute.xlu0 %942
        %v946 = vsel %vm554, %v916, 0
        %v949 = vsel %vm554, %v917, 0
        %v952 = vsel %vm554, %v918, 0
        %v955 = vsel %vm554, %v919, 0
        %957 = vmatprep.subr.mxu0 %v802
        %958 = vmatpush1.msra.mxu0 %v801
        %959 = vmatprep.subr.mxu0 %v805
        %960 = vmatpush1.msra.mxu0 %v804
        %961 = vmatprep.subr.mxu0 %v808
        %962 = vmatpush1.msra.mxu0 %v807
        %963 = vmatprep.subr.mxu0 %v811
        %964 = vmatpush1.msra.mxu0 %v810
        %965 = vmatprep.subr.mxu0 %v851
        %966 = vmatpush1.msra.mxu0 %v850
        %967 = vmatprep.subr.mxu0 %v853
        %968 = vmatpush1.msra.mxu0 %v852
        %969 = vmatprep.subr.mxu0 %v855
        %970 = vmatpush1.msra.mxu0 %v854
        %971 = vmatprep.subr.mxu0 %v857
        %972 = vmatpush1.msra.mxu0 %v856
        %973 = vmatprep.subr.mxu0 %v896
        %974 = vmatpush1.msra.mxu0 %v895
        %975 = vmatprep.subr.mxu0 %v898
        %976 = vmatpush1.msra.mxu0 %v897
        %977 = vmatprep.subr.mxu0 %v900
        %978 = vmatpush1.msra.mxu0 %v899
        %979 = vmatprep.subr.mxu0 %v902
        %980 = vmatpush1.msra.mxu0 %v901
        %981 = vmatprep.subr.mxu0 0.0
        %982 = vmatpush1.msra.mxu0 0.0
        %983 = vmatprep.subr.mxu0 0.0
        %984 = vmatpush1.msra.mxu0 0.0
        %985 = vmatprep.subr.mxu0 0.0
        %986 = vmatpush1.msra.mxu0 0.0
        %987 = vmatprep.subr.mxu0 0.0
        %988 = vmatpush1.msra.mxu0 0.0
        %989 = vmatprep.subr.mxu0 0.0
        %990 = vmatpush1.msra.mxu0 0.0
        %991 = vmatprep.subr.mxu0 0.0
        %992 = vmatpush1.msra.mxu0 0.0
        %993 = vmatprep.subr.mxu0 0.0
        %994 = vmatpush1.msra.mxu0 0.0
        %995 = vmatprep.subr.mxu0 0.0
        %996 = vmatpush1.msra.mxu0 0.0
        %997 = vmatprep.subr.mxu0 0.0
        %998 = vmatpush1.msra.mxu0 0.0
        %999 = vmatprep.subr.mxu0 0.0
        %1000 = vmatpush1.msra.mxu0 0.0
        %1001 = vmatprep.subr.mxu0 0.0
        %1002 = vmatpush1.msra.mxu0 0.0
        %1003 = vmatprep.subr.mxu0 0.0
        %1004 = vmatpush1.msra.mxu0 0.0
        %1005 = vmatprep.subr.mxu0 0.0
        %1006 = vmatpush1.msra.mxu0 0.0
        %1007 = vmatprep.subr.mxu0 0.0
        %1008 = vmatpush1.msra.mxu0 0.0
        %1009 = vmatprep.subr.mxu0 0.0
        %1010 = vmatpush1.msra.mxu0 0.0
        %1011 = vmatprep.subr.mxu0 0.0
        %1012 = vmatpush1.msra.mxu0 0.0
        %1013 = vmatprep.subr.mxu0 0.0
        %1014 = vmatpush1.msra.mxu0 0.0
        %1015 = vmatprep.subr.mxu0 0.0
        %1016 = vmatpush1.msra.mxu0 0.0
        %1017 = vmatprep.subr.mxu0 0.0
        %1018 = vmatpush1.msra.mxu0 0.0
        %1019 = vmatprep.subr.mxu0 0.0
        %1020 = vmatpush1.msra.mxu0 0.0
        %1021 = vmatprep.mubr.f32.mxu0 0.0
        %1022 = vmatmul.mubr.f32.gmra.mrb[0].mxu0 %v946
        %v1023 = vpop.f32.mrb[0].mxu0
        %v1024 = vadd.f32 %v928, %v1023
        %v1025 = vpop.f32.mrb[0].mxu0
        %v1026 = vadd.f32 %v928, %v1025
        %1027 = vmatprep.mubr.f32.mxu0 0.0
        %1028 = vmatmul.mubr.f32.gmra.mrb[0].mxu0 %v949
        %v1029 = vpop.f32.mrb[0].mxu0
        %v1030 = vadd.f32 %v933, %v1029
        %v1031 = vpop.f32.mrb[0].mxu0
        %v1032 = vadd.f32 %v933, %v1031
        %1033 = vmatprep.mubr.f32.mxu0 0.0
        %1034 = vmatmul.mubr.f32.gmra.mrb[0].mxu0 %v952
        %v1035 = vpop.f32.mrb[0].mxu0
        %v1036 = vadd.f32 %v938, %v1035
        %v1037 = vpop.f32.mrb[0].mxu0
        %v1038 = vadd.f32 %v938, %v1037
        %1039 = vmatprep.mubr.f32.mxu0 0.0
        %1040 = vmatmul.mubr.f32.gmra.mrb[0].mxu0 %v955
        %v1041 = vpop.f32.mrb[0].mxu0
        %v1042 = vadd.f32 %v943, %v1041
        %v1043 = vpop.f32.mrb[0].mxu0
        %v1044 = vadd.f32 %v943, %v1043
        %1045 = vdwg.mxu0
        %1046 = vmatprep.subr.mxu0 0.0
        %1047 = vmatpush1.msra.mxu0 %v803
        %1048 = vmatprep.subr.mxu0 0.0
        %1049 = vmatpush1.msra.mxu0 %v806
        %1050 = vmatprep.subr.mxu0 0.0
        %1051 = vmatpush1.msra.mxu0 %v809
        %1052 = vmatprep.subr.mxu0 0.0
        %1053 = vmatpush1.msra.mxu0 %v812
        %1054 = vmatprep.subr.mxu0 0.0
        %1055 = vmatpush1.msra.mxu0 %v830
        %1056 = vmatprep.subr.mxu0 0.0
        %1057 = vmatpush1.msra.mxu0 %v836
        %1058 = vmatprep.subr.mxu0 0.0
        %1059 = vmatpush1.msra.mxu0 %v842
        %1060 = vmatprep.subr.mxu0 0.0
        %1061 = vmatpush1.msra.mxu0 %v848
        %1062 = vmatprep.subr.mxu0 0.0
        %1063 = vmatpush1.msra.mxu0 %v875
        %1064 = vmatprep.subr.mxu0 0.0
        %1065 = vmatpush1.msra.mxu0 %v881
        %1066 = vmatprep.subr.mxu0 0.0
        %1067 = vmatpush1.msra.mxu0 %v887
        %1068 = vmatprep.subr.mxu0 0.0
        %1069 = vmatpush1.msra.mxu0 %v893
        %1070 = vmatprep.subr.mxu0 0.0
        %1071 = vmatpush1.msra.mxu0 0.0
        %1072 = vmatprep.subr.mxu0 0.0
        %1073 = vmatpush1.msra.mxu0 0.0
        %1074 = vmatprep.subr.mxu0 0.0
        %1075 = vmatpush1.msra.mxu0 0.0
        %1076 = vmatprep.subr.mxu0 0.0
        %1077 = vmatpush1.msra.mxu0 0.0
        %1078 = vmatprep.subr.mxu0 0.0
        %1079 = vmatpush1.msra.mxu0 0.0
        %1080 = vmatprep.subr.mxu0 0.0
        %1081 = vmatpush1.msra.mxu0 0.0
        %1082 = vmatprep.subr.mxu0 0.0
        %1083 = vmatpush1.msra.mxu0 0.0
        %1084 = vmatprep.subr.mxu0 0.0
        %1085 = vmatpush1.msra.mxu0 0.0
        %1086 = vmatprep.subr.mxu0 0.0
        %1087 = vmatpush1.msra.mxu0 0.0
        %1088 = vmatprep.subr.mxu0 0.0
        %1089 = vmatpush1.msra.mxu0 0.0
        %1090 = vmatprep.subr.mxu0 0.0
        %1091 = vmatpush1.msra.mxu0 0.0
        %1092 = vmatprep.subr.mxu0 0.0
        %1093 = vmatpush1.msra.mxu0 0.0
        %1094 = vmatprep.subr.mxu0 0.0
        %1095 = vmatpush1.msra.mxu0 0.0
        %1096 = vmatprep.subr.mxu0 0.0
        %1097 = vmatpush1.msra.mxu0 0.0
        %1098 = vmatprep.subr.mxu0 0.0
        %1099 = vmatpush1.msra.mxu0 0.0
        %1100 = vmatprep.subr.mxu0 0.0
        %1101 = vmatpush1.msra.mxu0 0.0
        %1102 = vmatprep.subr.mxu0 0.0
        %1103 = vmatpush1.msra.mxu0 0.0
        %1104 = vmatprep.subr.mxu0 0.0
        %1105 = vmatpush1.msra.mxu0 0.0
        %1106 = vmatprep.subr.mxu0 0.0
        %1107 = vmatpush1.msra.mxu0 0.0
        %1108 = vmatprep.subr.mxu0 0.0
        %1109 = vmatpush1.msra.mxu0 0.0
        %1110 = vmatprep.mubr.f32.mxu0 0.0
        %1111 = vmatmul.mubr.f32.gmra.mrb[0].mxu0 %v946
        %v1112 = vpop.f32.mrb[0].mxu0
        %v1113 = vadd.f32 %v928, %v1112
        %v1114 = vpop.f32.mrb[0].mxu0
        %1115 = vmatprep.mubr.f32.mxu0 0.0
        %1116 = vmatmul.mubr.f32.gmra.mrb[0].mxu0 %v949
        %v1117 = vpop.f32.mrb[0].mxu0
        %v1118 = vadd.f32 %v933, %v1117
        %v1119 = vpop.f32.mrb[0].mxu0
        %1120 = vmatprep.mubr.f32.mxu0 0.0
        %1121 = vmatmul.mubr.f32.gmra.mrb[0].mxu0 %v952
        %v1122 = vpop.f32.mrb[0].mxu0
        %v1123 = vadd.f32 %v938, %v1122
        %v1124 = vpop.f32.mrb[0].mxu0
        %1125 = vmatprep.mubr.f32.mxu0 0.0
        %1126 = vmatmul.mubr.f32.gmra.mrb[0].mxu0 %v955
        %v1127 = vpop.f32.mrb[0].mxu0
        %v1128 = vadd.f32 %v943, %v1127
        %v1129 = vpop.f32.mrb[0].mxu0
        %1130 = vdwg.mxu0
        %s1131 = sadd.s32 %s371, 4294967287
        %vm1132 = vcmp.gt.f32.partialorder %v1024, 0.0
        %vm1133 = vcmp.gt.f32.partialorder %v1026, 0.0
        %vm1134 = vcmp.gt.f32.partialorder %v1113, 0.0
        %vm1135 = vcmp.gt.f32.partialorder %v1030, 0.0
        %vm1136 = vcmp.gt.f32.partialorder %v1032, 0.0
        %vm1137 = vcmp.gt.f32.partialorder %v1118, 0.0
        %vm1138 = vcmp.gt.f32.partialorder %v1036, 0.0
        %vm1139 = vcmp.gt.f32.partialorder %v1038, 0.0
        %vm1140 = vcmp.gt.f32.partialorder %v1123, 0.0
        %vm1141 = vcmp.gt.f32.partialorder %v1042, 0.0
        %vm1142 = vcmp.gt.f32.partialorder %v1044, 0.0
        %vm1143 = vcmp.gt.f32.partialorder %v1128, 0.0
        %v1144 = vmul.f32 %v1024, 0.2
        %v1145 = vmul.f32 %v1026, 0.2
        %v1146 = vmul.f32 %v1113, 0.2
        %v1147 = vmul.f32 %v1030, 0.2
        %v1148 = vmul.f32 %v1032, 0.2
        %v1149 = vmul.f32 %v1118, 0.2
        %v1150 = vmul.f32 %v1036, 0.2
        %v1151 = vmul.f32 %v1038, 0.2
        %v1152 = vmul.f32 %v1123, 0.2
        %v1153 = vmul.f32 %v1042, 0.2
        %v1154 = vmul.f32 %v1044, 0.2
        %v1155 = vmul.f32 %v1128, 0.2
        %v1156 = vsel %vm1132, %v1024, %v1144
        %v1157 = vsel %vm1133, %v1026, %v1145
        %v1158 = vsel %vm1134, %v1113, %v1146
        %v1159 = vsel %vm1135, %v1030, %v1147
        %v1160 = vsel %vm1136, %v1032, %v1148
        %v1161 = vsel %vm1137, %v1118, %v1149
        %v1162 = vsel %vm1138, %v1036, %v1150
        %v1163 = vsel %vm1139, %v1038, %v1151
        %v1164 = vsel %vm1140, %v1123, %v1152
        %v1165 = vsel %vm1141, %v1042, %v1153
        %v1166 = vsel %vm1142, %v1044, %v1154
        %v1167 = vsel %vm1143, %v1128, %v1155
        %v1168 = vstv %s1131
        %v1169 = vadd.s32 %v1168, %v779
        %v1170 = vadd.s32 %v1168, %v780
        %v1171 = vadd.s32 %v1168, %v781
        %vm1172 = vcmp.ge.s32.totalorder %v1169, 0
        %vm1173 = vcmp.ge.s32.totalorder %v1170, 0
        %vm1174 = vcmp.ge.s32.totalorder %v1171, 0
        %vm1175 = vcmp.lt.s32.totalorder %v1169, 768
        %vm1176 = vcmp.lt.s32.totalorder %v1170, 768
        %vm1177 = vcmp.lt.s32.totalorder %v1171, 768
        %vm1178 = vmand %vm1172, %vm1175
        %vm1179 = vmand %vm1173, %vm1176
        %vm1180 = vmand %vm1174, %vm1177
        %v1181 = vsel %vm1178, 1, 0
        %v1182 = vsel %vm1179, 1, 0
        %v1183 = vsel %vm1180, 1, 0
        %vm1184 = vcmp.eq.s32.totalorder %v1181, 1
        %vm1185 = vcmp.eq.s32.totalorder %v1182, 1
        %vm1186 = vcmp.eq.s32.totalorder %v1183, 1
        %v1187 = vsel %vm1184, %v1156, 0.0
        %v1188 = vsel %vm1185, %v1157, 0.0
        %v1189 = vsel %vm1186, %v1158, 0.0
        %v1190 = vsel %vm1184, %v1159, 0.0
        %v1191 = vsel %vm1185, %v1160, 0.0
        %v1192 = vsel %vm1186, %v1161, 0.0
        %v1193 = vsel %vm1184, %v1162, 0.0
        %v1194 = vsel %vm1185, %v1163, 0.0
        %v1195 = vsel %vm1186, %v1164, 0.0
        %v1196 = vsel %vm1184, %v1165, 0.0
        %v1197 = vsel %vm1185, %v1166, 0.0
        %v1198 = vsel %vm1186, %v1167, 0.0
        %1211 = vrot.lane.b32.xlu0 %v1187, 119
        %v1212 = vpop.permute.xlu0 %1211
        %1213 = vrot.lane.b32.xlu0 %v1188, 119
        %v1214 = vpop.permute.xlu0 %1213
        %1215 = vrot.lane.b32.xlu0 %v1189, 119
        %v1216 = vpop.permute.xlu0 %1215
        %1217 = vrot.lane.b32.xlu0 %v1190, 119
        %v1218 = vpop.permute.xlu0 %1217
        %1219 = vrot.lane.b32.xlu0 %v1191, 119
        %v1220 = vpop.permute.xlu0 %1219
        %1221 = vrot.lane.b32.xlu0 %v1192, 119
        %v1222 = vpop.permute.xlu0 %1221
        %1223 = vrot.lane.b32.xlu0 %v1193, 119
        %v1224 = vpop.permute.xlu0 %1223
        %1225 = vrot.lane.b32.xlu0 %v1194, 119
        %v1226 = vpop.permute.xlu0 %1225
        %1227 = vrot.lane.b32.xlu0 %v1195, 119
        %v1228 = vpop.permute.xlu0 %1227
        %1229 = vrot.lane.b32.xlu0 %v1196, 119
        %v1230 = vpop.permute.xlu0 %1229
        %1231 = vrot.lane.b32.xlu0 %v1197, 119
        %v1232 = vpop.permute.xlu0 %1231
        %1233 = vrot.lane.b32.xlu0 %v1198, 119
        %v1234 = vpop.permute.xlu0 %1233
        %vm1235 = vcmask 973824
        %v1236 = vsel %vm1235, %v1212, %v1214
        %v1237 = vsel %vm1235, %v1214, %v1216
        %v1238 = vsel %vm1235, %v1218, %v1220
        %v1239 = vsel %vm1235, %v1220, %v1222
        %v1240 = vsel %vm1235, %v1224, %v1226
        %v1241 = vsel %vm1235, %v1226, %v1228
        %v1242 = vsel %vm1235, %v1230, %v1232
        %v1243 = vsel %vm1235, %v1232, %v1234
        %1252 = vrot.lane.b32.xlu0 %v1187, 110
        %v1253 = vpop.permute.xlu0 %1252
        %1254 = vrot.lane.b32.xlu0 %v1188, 110
        %v1255 = vpop.permute.xlu0 %1254
        %1256 = vrot.lane.b32.xlu0 %v1189, 110
        %v1257 = vpop.permute.xlu0 %1256
        %1258 = vrot.lane.b32.xlu0 %v1190, 110
        %v1259 = vpop.permute.xlu0 %1258
        %1260 = vrot.lane.b32.xlu0 %v1191, 110
        %v1261 = vpop.permute.xlu0 %1260
        %1262 = vrot.lane.b32.xlu0 %v1192, 110
        %v1263 = vpop.permute.xlu0 %1262
        %1264 = vrot.lane.b32.xlu0 %v1193, 110
        %v1265 = vpop.permute.xlu0 %1264
        %1266 = vrot.lane.b32.xlu0 %v1194, 110
        %v1267 = vpop.permute.xlu0 %1266
        %1268 = vrot.lane.b32.xlu0 %v1195, 110
        %v1269 = vpop.permute.xlu0 %1268
        %1270 = vrot.lane.b32.xlu0 %v1196, 110
        %v1271 = vpop.permute.xlu0 %1270
        %1272 = vrot.lane.b32.xlu0 %v1197, 110
        %v1273 = vpop.permute.xlu0 %1272
        %1274 = vrot.lane.b32.xlu0 %v1198, 110
        %v1275 = vpop.permute.xlu0 %1274
        %vm1276 = vcmask 900096
        %v1277 = vsel %vm1276, %v1253, %v1255
        %v1278 = vsel %vm1276, %v1255, %v1257
        %v1279 = vsel %vm1276, %v1259, %v1261
        %v1280 = vsel %vm1276, %v1261, %v1263
        %v1281 = vsel %vm1276, %v1265, %v1267
        %v1282 = vsel %vm1276, %v1267, %v1269
        %v1283 = vsel %vm1276, %v1271, %v1273
        %v1284 = vsel %vm1276, %v1273, %v1275
        %s1293 = scalar_lea.vmem %s1, 64
        %v1294 = vld [vmem:[%s1293] sm:$0xff]
        %v1295 = vld [vmem:[%s1293 + $0x8] sm:$0xff]
        %v1296 = vld [vmem:[%s1293 + $0x10] sm:$0xff]
        %v1297 = vld [vmem:[%s1293 + $0x18] sm:$0xff]
        %s1298 = scalar_lea.vmem %s2, 64
        %v1299 = vld [vmem:[%s1298] sm:$0xff]
        %v1300 = vld [vmem:[%s1298 + $0x8] sm:$0xff]
        %v1301 = vld [vmem:[%s1298 + $0x10] sm:$0xff]
        %v1302 = vld [vmem:[%s1298 + $0x18] sm:$0xff]
        %1304 = vset.pattern.permute.xlu0 0
        %1305 = vperm.xlu0 %1304, %v1299
        %v1306 = vpop.permute.xlu0 %1305
        %1309 = vset.pattern.permute.xlu0 0
        %1310 = vperm.xlu0 %1309, %v1300
        %v1311 = vpop.permute.xlu0 %1310
        %1314 = vset.pattern.permute.xlu0 0
        %1315 = vperm.xlu0 %1314, %v1301
        %v1316 = vpop.permute.xlu0 %1315
        %1319 = vset.pattern.permute.xlu0 0
        %1320 = vperm.xlu0 %1319, %v1302
        %v1321 = vpop.permute.xlu0 %1320
        %v1324 = vsel %vm554, %v1294, 0
        %v1327 = vsel %vm554, %v1295, 0
        %v1330 = vsel %vm554, %v1296, 0
        %v1333 = vsel %vm554, %v1297, 0
        %1335 = vmatprep.subr.mxu0 %v1188
        %1336 = vmatpush1.msra.mxu0 %v1187
        %1337 = vmatprep.subr.mxu0 %v1191
        %1338 = vmatpush1.msra.mxu0 %v1190
        %1339 = vmatprep.subr.mxu0 %v1194
        %1340 = vmatpush1.msra.mxu0 %v1193
        %1341 = vmatprep.subr.mxu0 %v1197
        %1342 = vmatpush1.msra.mxu0 %v1196
        %1343 = vmatprep.subr.mxu0 %v1237
        %1344 = vmatpush1.msra.mxu0 %v1236
        %1345 = vmatprep.subr.mxu0 %v1239
        %1346 = vmatpush1.msra.mxu0 %v1238
        %1347 = vmatprep.subr.mxu0 %v1241
        %1348 = vmatpush1.msra.mxu0 %v1240
        %1349 = vmatprep.subr.mxu0 %v1243
        %1350 = vmatpush1.msra.mxu0 %v1242
        %1351 = vmatprep.subr.mxu0 %v1278
        %1352 = vmatpush1.msra.mxu0 %v1277
        %1353 = vmatprep.subr.mxu0 %v1280
        %1354 = vmatpush1.msra.mxu0 %v1279
        %1355 = vmatprep.subr.mxu0 %v1282
        %1356 = vmatpush1.msra.mxu0 %v1281
        %1357 = vmatprep.subr.mxu0 %v1284
        %1358 = vmatpush1.msra.mxu0 %v1283
        %1359 = vmatprep.subr.mxu0 0.0
        %1360 = vmatpush1.msra.mxu0 0.0
        %1361 = vmatprep.subr.mxu0 0.0
        %1362 = vmatpush1.msra.mxu0 0.0
        %1363 = vmatprep.subr.mxu0 0.0
        %1364 = vmatpush1.msra.mxu0 0.0
        %1365 = vmatprep.subr.mxu0 0.0
        %1366 = vmatpush1.msra.mxu0 0.0
        %1367 = vmatprep.subr.mxu0 0.0
        %1368 = vmatpush1.msra.mxu0 0.0
        %1369 = vmatprep.subr.mxu0 0.0
        %1370 = vmatpush1.msra.mxu0 0.0
        %1371 = vmatprep.subr.mxu0 0.0
        %1372 = vmatpush1.msra.mxu0 0.0
        %1373 = vmatprep.subr.mxu0 0.0
        %1374 = vmatpush1.msra.mxu0 0.0
        %1375 = vmatprep.subr.mxu0 0.0
        %1376 = vmatpush1.msra.mxu0 0.0
        %1377 = vmatprep.subr.mxu0 0.0
        %1378 = vmatpush1.msra.mxu0 0.0
        %1379 = vmatprep.subr.mxu0 0.0
        %1380 = vmatpush1.msra.mxu0 0.0
        %1381 = vmatprep.subr.mxu0 0.0
        %1382 = vmatpush1.msra.mxu0 0.0
        %1383 = vmatprep.subr.mxu0 0.0
        %1384 = vmatpush1.msra.mxu0 0.0
        %1385 = vmatprep.subr.mxu0 0.0
        %1386 = vmatpush1.msra.mxu0 0.0
        %1387 = vmatprep.subr.mxu0 0.0
        %1388 = vmatpush1.msra.mxu0 0.0
        %1389 = vmatprep.subr.mxu0 0.0
        %1390 = vmatpush1.msra.mxu0 0.0
        %1391 = vmatprep.subr.mxu0 0.0
        %1392 = vmatpush1.msra.mxu0 0.0
        %1393 = vmatprep.subr.mxu0 0.0
        %1394 = vmatpush1.msra.mxu0 0.0
        %1395 = vmatprep.subr.mxu0 0.0
        %1396 = vmatpush1.msra.mxu0 0.0
        %1397 = vmatprep.subr.mxu0 0.0
        %1398 = vmatpush1.msra.mxu0 0.0
        %1399 = vmatprep.mubr.f32.mxu0 0.0
        %1400 = vmatmul.mubr.f32.gmra.mrb[0].mxu0 %v1324
        %v1401 = vpop.f32.mrb[0].mxu0
        %v1402 = vadd.f32 %v1306, %v1401
        %v1403 = vpop.f32.mrb[0].mxu0
        %v1404 = vadd.f32 %v1306, %v1403
        %1405 = vmatprep.mubr.f32.mxu0 0.0
        %1406 = vmatmul.mubr.f32.gmra.mrb[0].mxu0 %v1327
        %v1407 = vpop.f32.mrb[0].mxu0
        %v1408 = vadd.f32 %v1311, %v1407
        %v1409 = vpop.f32.mrb[0].mxu0
        %v1410 = vadd.f32 %v1311, %v1409
        %1411 = vmatprep.mubr.f32.mxu0 0.0
        %1412 = vmatmul.mubr.f32.gmra.mrb[0].mxu0 %v1330
        %v1413 = vpop.f32.mrb[0].mxu0
        %v1414 = vadd.f32 %v1316, %v1413
        %v1415 = vpop.f32.mrb[0].mxu0
        %v1416 = vadd.f32 %v1316, %v1415
        %1417 = vmatprep.mubr.f32.mxu0 0.0
        %1418 = vmatmul.mubr.f32.gmra.mrb[0].mxu0 %v1333
        %v1419 = vpop.f32.mrb[0].mxu0
        %v1420 = vadd.f32 %v1321, %v1419
        %v1421 = vpop.f32.mrb[0].mxu0
        %v1422 = vadd.f32 %v1321, %v1421
        %1423 = vdwg.mxu0
        %s1424 = smul.addr %s372, 8
        %s1425 = scalar_lea.vmem %s182, %s1424
        %v1426 = vld [vmem:[%s1425] sm:$0xff]
        %v1427 = vld [vmem:[%s1425 + $0x8] sm:$0xff]
        %v1428 = vld [vmem:[%s1425 + $0x30] sm:$0xff]
        %v1429 = vld [vmem:[%s1425 + $0x38] sm:$0xff]
        %v1430 = vld [vmem:[%s1425 + $0x60] sm:$0xff]
        %v1431 = vld [vmem:[%s1425 + $0x68] sm:$0xff]
        %v1432 = vld [vmem:[%s1425 + $0x90] sm:$0xff]
        %v1433 = vld [vmem:[%s1425 + $0x98] sm:$0xff]
        %v1434 = vadd.f32 %v1402, %v1426
        %v1435 = vadd.f32 %v1404, %v1427
        %v1436 = vadd.f32 %v1408, %v1428
        %v1437 = vadd.f32 %v1410, %v1429
        %v1438 = vadd.f32 %v1414, %v1430
        %v1439 = vadd.f32 %v1416, %v1431
        %v1440 = vadd.f32 %v1420, %v1432
        %v1441 = vadd.f32 %v1422, %v1433
        %1442 = vst [vmem:[%s177] sm:$0xff] %v1434
        %1443 = vst [vmem:[%s177 + $0x8] sm:$0xff] %v1435
        %1444 = vst [vmem:[%s177 + $0x10] sm:$0xff] %v1436
        %1445 = vst [vmem:[%s177 + $0x18] sm:$0xff] %v1437
        %1446 = vst [vmem:[%s177 + $0x20] sm:$0xff] %v1438
        %1447 = vst [vmem:[%s177 + $0x28] sm:$0xff] %v1439
        %1448 = vst [vmem:[%s177 + $0x30] sm:$0xff] %v1440
        %1449 = vst [vmem:[%s177 + $0x38] sm:$0xff] %v1441
        %s1450 = sand.u32 %s107, 1
        %s1451 = scalar_lea.sflag [#allocation4], %s1450
        %s1452 = sand.u32 %s107, 1
        %s1453 = smul.addr %s1452, 64
        %s1454 = scalar_lea.vmem [#allocation3], %s1453
        // Predicated region
        $region37: #{residual_block_forward.3} parent=31 // pred_check
          %p1455 = pneg %p117
        $region38: #{residual_block_forward.3} parent=31 // pred_check_branch
          %1457 = sbr.rel (%p1455) target = $region40
        $region39: #{residual_block_forward.3} parent=31 // pred_region
          %s1458 = smul.u32 2, %s22
          %s1460 = ssub.s32 1024, 1024
          %1461 = vsyncadd %s1451, %s1460
          %s1462 = smul.addr %s21, 24
          %s1463 = sadd.s32 %s1458, %s1462
          %s1464 = smul.addr %s1463, 128
          %s1465 = scalar_lea.hbm %s3, %s1464
          %s1466 = sshll.u32 %s1454, 4
          %s1467 = int_to_ptr.vmem [resolvable:$true] %s1466
          %1472 = dma.vmem_to_hbm [thread:$0]  %s1467, 1024, %s1465, %s1451, 256, 768, 16
        $region40: #{residual_block_forward.3} parent=31 // pred_fallthru
          _
      $region32: #{residual_block_forward.3} parent=5 // pred_fallthru
        _
      %p1473 = scmp.le.s32.totalorder 2, %s12
      // Predicated region
      $region41: #{residual_block_forward.3} parent=5 // pred_check
        %p1474 = pneg %p1473
      $region42: #{residual_block_forward.3} parent=5 // pred_check_branch
        %1476 = sbr.rel (%p1474) target = $region44
      $region43: #{residual_block_forward.3} parent=5 // pred_region
        %s1477 = ssub.s32 %s12, 2
        // Predicated region
        $region45: #{residual_block_forward.3} parent=43 // pred_check
          %p1478 = pneg %p123
        $region46: #{residual_block_forward.3} parent=43 // pred_check_branch
          %1480 = sbr.rel (%p1478) target = $region48
        $region47: #{residual_block_forward.3} parent=43 // pred_region
          %s1481 = sand.u32 %s108, 1
          %s1482 = scalar_lea.sflag [#allocation4], %s1481
          %s1483 = sand.u32 %s108, 1
          %s1484 = smul.addr %s1483, 64
          %s1485 = scalar_lea.vmem [#allocation3], %s1484
          %1486 = dma.done %s1482, 1024
        $region48: #{residual_block_forward.3} parent=43 // pred_fallthru
          _
      $region44: #{residual_block_forward.3} parent=5 // pred_fallthru
        _
    $region6: #{residual_block_forward.3} parent=1 // loop_footer
      %s16 = sadd.s32 1, %s12
    $region7: #{residual_block_forward.3} parent=1 // loop_footer_branch
      %11 = sbr.rel target = $region3
    $region8: #{residual_block_forward.3} parent=1 // loop_exit
      _
    %1487 = vsyncpa [#allocation4], 1
    %s1488 = scalar_lea.sflag [#allocation4], 1
    %1489 = vsyncpa %s1488, 1

</llo_original>
